<compile_context>
chip_gen: v5e
topology: v5e:2x2
jax: 0.10.0
libtpu: 0.0.40
codegen_flags: <defaults>
</compile_context>

<pallas_src>
import functools
import math

import jax
import jax.numpy as jnp
from jax.experimental import pallas as pl
from jax.experimental.pallas import tpu as pltpu


# -----------------------------------------------------------------------------
# Fused kernel: all layers for one batch tile.  grid = (batch_tiles, num_layers)
# -----------------------------------------------------------------------------
def _fused_layers_kernel(*refs, block_b, seq_q, seq_c, nhead, eps, has_cache, mx_dtype):
    if has_cache:
        (x_ref, cache_ref,
         wq_ref, wk_ref, wv_ref, bq_ref, bk_ref, bv_ref, wo_ref, bo_ref,
         ln1w_ref, ln1b_ref, ln3w_ref, ln3b_ref,
         w1_ref, b1_ref, w2_ref, b2_ref,
         out_ref, act_ref, ctx_ref) = refs
    else:
        (x_ref,
         wq_ref, wk_ref, wv_ref, bq_ref, bk_ref, bv_ref, wo_ref, bo_ref,
         ln1w_ref, ln1b_ref, ln3w_ref, ln3b_ref,
         w1_ref, b1_ref, w2_ref, b2_ref,
         out_ref, act_ref, ctx_ref) = refs
        cache_ref = None

    layer = pl.program_id(1)

    # First layer of this batch tile: load new-token activations into the
    # VMEM-resident accumulator carried across the "arbitrary" layer axis.
    @pl.when(layer == 0)
    def _():
        act_ref[...] = x_ref[...]

    x = act_ref[...]                              # (R, D) f32, R = block_b * seq_q
    R, d_model = x.shape
    hd = d_model // nhead
    scale = jnp.float32(1.0 / (hd ** 0.5))
    f32 = jnp.float32

    # ---- full-width (lane-dense) Q/K/V projections: (R,D)@(D,D), f32 accumulation ----
    xm = x.astype(mx_dtype)
    q = jnp.dot(xm, wq_ref[0], preferred_element_type=f32) + bq_ref[0]
    k = jnp.dot(xm, wk_ref[0], preferred_element_type=f32) + bk_ref[0]
    v = jnp.dot(xm, wv_ref[0], preferred_element_type=f32) + bv_ref[0]
    q3 = q.reshape(block_b, seq_q, d_model)
    k3 = k.reshape(block_b, seq_q, d_model)
    v3 = v.reshape(block_b, seq_q, d_model)

    if has_cache:
        # Cache K/V projection hoisted out of the head loop, full width, once per layer.
        cm = cache_ref[0].astype(mx_dtype)        # (Rc, D), Rc = block_b * seq_c
        kc = jnp.dot(cm, wk_ref[0], preferred_element_type=f32) + bk_ref[0]
        vc = jnp.dot(cm, wv_ref[0], preferred_element_type=f32) + bv_ref[0]
        kc3 = kc.reshape(block_b, seq_c, d_model)
        vc3 = vc.reshape(block_b, seq_c, d_model)
        if seq_q > 1:
            row = jax.lax.broadcasted_iota(jnp.int32, (block_b, seq_q, seq_q), 1)
            col = jax.lax.broadcasted_iota(jnp.int32, (block_b, seq_q, seq_q), 2)
            causal_ok = col <= row                # mask[-S:]: cached columns unmasked
        else:
            causal_ok = None
    else:
        causal_ok = None                          # cache is None => module applies no mask

    # ---- attention: heads unrolled, batched over the batch-tile dim (no per-batch
    #      Python loop / concat); per-head context stored into a lane-dense slab ----
    for h in range(nhead):
        sl = slice(h * hd, (h + 1) * hd)
        qh = q3[:, :, sl].astype(mx_dtype)        # (b, Sq, hd)
        kh = k3[:, :, sl].astype(mx_dtype)
        vh = v3[:, :, sl].astype(mx_dtype)
        s_new = jnp.einsum('bqd,bkd->bqk', qh, kh,
                           preferred_element_type=f32) * scale          # (b, Sq, Sq)
        if has_cache:
            if causal_ok is not None:
                s_new = jnp.where(causal_ok, s_new, f32(-1e30))
            kch = kc3[:, :, sl].astype(mx_dtype)
            vch = vc3[:, :, sl].astype(mx_dtype)
            s_old = jnp.einsum('bqd,bkd->bqk', qh, kch,
                               preferred_element_type=f32) * scale      # (b, Sq, Sc)
            m = jnp.maximum(jnp.max(s_new, axis=-1, keepdims=True),
                            jnp.max(s_old, axis=-1, keepdims=True))
            p_new = jnp.exp(s_new - m)
            p_old = jnp.exp(s_old - m)
            denom = (jnp.sum(p_new, axis=-1, keepdims=True)
                     + jnp.sum(p_old, axis=-1, keepdims=True))
            ctx = (jnp.einsum('bqk,bkd->bqd', p_new.astype(mx_dtype), vh,
                              preferred_element_type=f32)
                   + jnp.einsum('bqk,bkd->bqd', p_old.astype(mx_dtype), vch,
                                preferred_element_type=f32))
        else:
            m = jnp.max(s_new, axis=-1, keepdims=True)
            p_new = jnp.exp(s_new - m)
            denom = jnp.sum(p_new, axis=-1, keepdims=True)
            ctx = jnp.einsum('bqk,bkd->bqd', p_new.astype(mx_dtype), vh,
                             preferred_element_type=f32)
        # softmax normalization on the EUP (approx reciprocal), not the VALU
        ctx = ctx * pl.reciprocal(denom, approx=True)                   # (b, Sq, hd)
        ctx_ref[:, sl] = ctx.reshape(R, hd)

    # ---- full-width (lane-dense) out-projection over the assembled context slab ----
    sa = jnp.dot(ctx_ref[...].astype(mx_dtype), wo_ref[0],
                 preferred_element_type=f32) + bo_ref[0]                # (R, D)

    def layer_norm(z, w_ref, b_ref):
        mu = jnp.mean(z, axis=-1, keepdims=True)
        var = jnp.mean((z - mu) ** 2, axis=-1, keepdims=True)
        return (z - mu) * jax.lax.rsqrt(var + eps) * w_ref[0] + b_ref[0]

    # norm_first=False:  x = norm1(x + sa(x));  x = norm3(x + ff(x))
    h1 = layer_norm(x + sa, ln1w_ref, ln1b_ref)

    ff = jnp.dot(h1.astype(mx_dtype), w1_ref[0], preferred_element_type=f32) + b1_ref[0]
    ff = jnp.maximum(ff, 0.0)                                           # F.relu
    ff = jnp.dot(ff.astype(mx_dtype), w2_ref[0], preferred_element_type=f32) + b2_ref[0]

    y = layer_norm(h1 + ff, ln3w_ref, ln3b_ref)

    act_ref[...] = y                              # carry activation to next layer
    out_ref[0] = y                                # this layer's new-token output (cache)


# -----------------------------------------------------------------------------
# Wrapper around pallas_call (all layers fused).
# -----------------------------------------------------------------------------
def _run_fused_layers(x2d, cache2d, packed, *, B, seq_q, seq_c, nhead, eps,
                      block_b=None):
    D = x2d.shape[-1]
    L = packed["wq"].shape[0]
    if block_b is None:
        block_b = B            # single tile: weights stream exactly once per layer.
        # On v7x use block_b = B // 2 so both TensorCores get work on the parallel axis.
    assert B % block_b == 0
    nbt = B // block_b
    R = block_b * seq_q
    Rc = block_b * seq_c
    has_cache = cache2d is not None

    w_names = ("wq", "wk", "wv", "bq", "bk", "bv", "wo", "bo",
               "ln1w", "ln1b", "ln3w", "ln3b", "w1", "b1", "w2", "b2")

    def wspec(name):
        a = packed[name]
        return pl.BlockSpec((1, a.shape[1], a.shape[2]), lambda bt, l: (l, 0, 0))

    in_specs = [pl.BlockSpec((R, D), lambda bt, l: (bt, 0))]   # new-token activations
    inputs = [x2d]
    if has_cache:
        in_specs.append(pl.BlockSpec((1, Rc, D), lambda bt, l: (l, bt, 0)))
        inputs.append(cache2d)
    for nm in w_names:
        in_specs.append(wspec(nm))
        inputs.append(packed[nm])

    # VMEM budget derived from the actual tile sizes (double-buffered inputs/outputs
    # plus resident scratch), capped at this device's VMEM capacity.
    w_bytes = sum(math.prod(packed[nm].shape[1:]) * packed[nm].dtype.itemsize
                  for nm in w_names)
    est = (2 * R * D * 4                         # act + ctx scratch (f32)
           + 2 * 2 * R * D * 4                   # x in + layer out, double-buffered
           + (2 * Rc * D * 4 if has_cache else 0)
           + 2 * w_bytes)                        # per-layer weights, double-buffered
    try:
        vmem_cap = int(pltpu.get_tpu_info().vmem_capacity_bytes)
    except Exception:
        vmem_cap = 64 * 1024 * 1024              # v7x lower bound; always safe
    vmem_limit = min(vmem_cap, max(32 * 1024 * 1024, int(est * 1.25) + (2 << 20)))

    kernel = functools.partial(
        _fused_layers_kernel, block_b=block_b, seq_q=seq_q, seq_c=seq_c,
        nhead=nhead, eps=eps, has_cache=has_cache, mx_dtype=packed["wq"].dtype)

    return pl.pallas_call(
        kernel,
        out_shape=jax.ShapeDtypeStruct((L, B * seq_q, D), jnp.float32),
        grid_spec=pltpu.PrefetchScalarGridSpec(
            num_scalar_prefetch=0,
            grid=(nbt, L),                       # batch tiles (parallel), layers (arbitrary)
            in_specs=in_specs,
            out_specs=pl.BlockSpec((1, R, D), lambda bt, l: (l, bt, 0)),
            scratch_shapes=[pltpu.VMEM((R, D), jnp.float32),    # resident activation
                            pltpu.VMEM((R, D), jnp.float32)]),  # per-layer attn context
        compiler_params=pltpu.CompilerParams(
            dimension_semantics=("parallel", "arbitrary"),
            vmem_limit_bytes=vmem_limit),
    )(*inputs)


# -----------------------------------------------------------------------------
# Host-side parameter packing (one-time): pre-transpose + stack over layers.
# Big matmul weights optionally cast to bf16 (MXU-native on v6e/v7x); biases/LN stay f32.
# -----------------------------------------------------------------------------
def pack_layer_params(layer_params, param_dtype=jnp.float32):
    D = layer_params[0]["wo"].shape[0]

    def stack(fn, dtype=jnp.float32):
        return jnp.stack([fn(p) for p in layer_params], axis=0).astype(dtype)

    return {
        "wq": stack(lambda p: p["wqkv"][0:D].T, param_dtype),           # (L, D, D) [in,out]
        "wk": stack(lambda p: p["wqkv"][D:2 * D].T, param_dtype),
        "wv": stack(lambda p: p["wqkv"][2 * D:3 * D].T, param_dtype),
        "bq": stack(lambda p: p["bqkv"][:, 0:D]),                       # (L, 1, D)
        "bk": stack(lambda p: p["bqkv"][:, D:2 * D]),
        "bv": stack(lambda p: p["bqkv"][:, 2 * D:3 * D]),
        "wo": stack(lambda p: p["wo"].T, param_dtype),                  # (L, D, D)
        "bo": stack(lambda p: p["bo"]),                                 # (L, 1, D)
        "ln1w": stack(lambda p: p["ln1w"]),
        "ln1b": stack(lambda p: p["ln1b"]),
        "ln3w": stack(lambda p: p["ln3w"]),
        "ln3b": stack(lambda p: p["ln3b"]),
        "w1": stack(lambda p: p["w1"].T, param_dtype),                  # (L, D, Dff)
        "b1": stack(lambda p: p["b1"]),                                 # (L, 1, Dff)
        "w2": stack(lambda p: p["w2"].T, param_dtype),                  # (L, Dff, D)
        "b2": stack(lambda p: p["b2"]),                                 # (L, 1, D)
    }


# -----------------------------------------------------------------------------
# Full CausalTransformerDecoder forward (eval mode).  Returns (output, new_cache).
# -----------------------------------------------------------------------------
def causal_transformer_decoder_forward(tgt, packed_params, *, nhead, cache=None,
                                       eps=1e-5, block_b=None):
    B, S, D = tgt.shape
    L = packed_params["wq"].shape[0]
    assert D % nhead == 0

    x2d = tgt.reshape(B * S, D)
    if cache is not None:
        Sc = cache.shape[2]
        cache2d = cache[:L].reshape(L, B * Sc, D)   # cache[l] is the kv cache of layer l+1
    else:
        Sc = 0
        cache2d = None

    layer_outs = _run_fused_layers(
        x2d, cache2d, packed_params, B=B, seq_q=S, seq_c=Sc,
        nhead=nhead, eps=eps, block_b=block_b).reshape(L, B, S, D)

    output = layer_outs[-1]
    new_tokens = jnp.concatenate([tgt[None], layer_outs], axis=0)       # (L+1, B, S, D)
    if cache is None:
        new_cache = new_tokens
    else:
        new_cache = jnp.concatenate([cache, new_tokens], axis=2)        # single fused concat
    return output, new_cache


# -----------------------------------------------------------------------------
# Pure-JAX reference (PyTorch-layout params) for correctness checks.
# -----------------------------------------------------------------------------
def generate_square_subsequent_mask(sz):
    return jnp.triu(jnp.full((sz, sz), -jnp.inf, dtype=jnp.float32), k=1)


def ref_layer(x, kv, mask, p, *, nhead, eps=1e-5):
    B, Sq, D = x.shape
    Sk = kv.shape[1]
    hd = D // nhead
    q = x @ p["wqkv"][:D].T + p["bqkv"][0, :D]
    k = kv @ p["wqkv"][D:2 * D].T + p["bqkv"][0, D:2 * D]
    v = kv @ p["wqkv"][2 * D:].T + p["bqkv"][0, 2 * D:]
    qh = q.reshape(B, Sq, nhead, hd).transpose(0, 2, 1, 3)
    kh = k.reshape(B, Sk, nhead, hd).transpose(0, 2, 1, 3)
    vh = v.reshape(B, Sk, nhead, hd).transpose(0, 2, 1, 3)
    s = jnp.einsum("bhqd,bhkd->bhqk", qh, kh) / (hd ** 0.5) + mask
    a = jax.nn.softmax(s, axis=-1)
    o = jnp.einsum("bhqk,bhkd->bhqd", a, vh).transpose(0, 2, 1, 3).reshape(B, Sq, D)
    sa = o @ p["wo"].T + p["bo"][0]

    def ln(z, w, b):
        m = z.mean(-1, keepdims=True)
        var = ((z - m) ** 2).mean(-1, keepdims=True)
        return (z - m) / jnp.sqrt(var + eps) * w[0] + b[0]

    h1 = ln(x + sa, p["ln1w"], p["ln1b"])
    ff = jnp.maximum(h1 @ p["w1"].T + p["b1"][0], 0.0) @ p["w2"].T + p["b2"][0]
    return ln(h1 + ff, p["ln3w"], p["ln3b"])


def ref_decoder_forward(tgt, layer_params, *, nhead, cache=None):
    B, S, D = tgt.shape
    if cache is not None:
        key_length = S + cache.shape[2]
        mask = generate_square_subsequent_mask(key_length)[-S:]
    else:
        mask = jnp.zeros((S, S), dtype=jnp.float32)
    output = tgt
    new_token_cache = [
        output if cache is None else jnp.concatenate([cache[0], output], axis=1)]
    for i, p in enumerate(layer_params, start=1):
        layer_cache = None if cache is None else cache[i - 1]
        kv = output if layer_cache is None else jnp.concatenate(
            [layer_cache, output], axis=1)
        output = ref_layer(output, kv, mask, p, nhead=nhead)
        new_token_cache.append(
            output if cache is None else jnp.concatenate([cache[i], output], axis=1))
    return output, jnp.stack(new_token_cache, axis=0)


# -----------------------------------------------------------------------------
# Deterministic synthetic params (PyTorch layout, one dict per layer).
# -----------------------------------------------------------------------------
def init_layer_params(key, d_model, dff):
    ks = jax.random.split(key, 10)
    s = 0.05
    return {
        "wqkv": s * jax.random.normal(ks[0], (3 * d_model, d_model), jnp.float32),
        "bqkv": s * jax.random.normal(ks[1], (1, 3 * d_model), jnp.float32),
        "wo":   s * jax.random.normal(ks[2], (d_model, d_model), jnp.float32),
        "bo":   s * jax.random.normal(ks[3], (1, d_model), jnp.float32),
        "ln1w": 1.0 + 0.01 * jax.random.normal(ks[4], (1, d_model), jnp.float32),
        "ln1b": 0.01 * jax.random.normal(ks[5], (1, d_model), jnp.float32),
        "ln3w": 1.0 + 0.01 * jax.random.normal(ks[6], (1, d_model), jnp.float32),
        "ln3b": 0.01 * jax.random.normal(ks[7], (1, d_model), jnp.float32),
        "w1":   s * jax.random.normal(ks[8], (dff, d_model), jnp.float32),
        "b1":   jnp.zeros((1, dff), jnp.float32),
        "w2":   s * jax.random.normal(ks[9], (d_model, dff), jnp.float32),
        "b2":   jnp.zeros((1, d_model), jnp.float32),
    }


if __name__ == "__main__":
    D_MODEL, NHEAD, DFF, NUM_LAYERS = 32, 4, 64, 2
    B, S = 2, 8

    key = jax.random.PRNGKey(0)
    k_tgt, k_new, *k_layers = jax.random.split(key, 2 + NUM_LAYERS)
    layer_params = [init_layer_params(k, D_MODEL, DFF) for k in k_layers]
    packed = pack_layer_params(layer_params)                       # f32 weights

    TOL = dict(atol=2e-3, rtol=2e-3)   # approx-reciprocal softmax normalization

    # --- first call: full prompt, no cache (module applies no mask here) ---
    tgt = jax.random.normal(k_tgt, (B, S, D_MODEL), jnp.float32)
    out, new_cache = causal_transformer_decoder_forward(
        tgt, packed, nhead=NHEAD, cache=None)
    out = jax.block_until_ready(out)
    new_cache = jax.block_until_ready(new_cache)

    out_ref, cache_ref = ref_decoder_forward(tgt, layer_params, nhead=NHEAD, cache=None)
    assert out.shape == (B, S, D_MODEL)
    assert new_cache.shape == (NUM_LAYERS + 1, B, S, D_MODEL)
    assert jnp.allclose(out, out_ref, **TOL)
    assert jnp.allclose(new_cache, cache_ref, **TOL)

    # --- incremental step: one new token with cache (causal-mask path) ---
    new_tok = jax.random.normal(k_new, (B, 1, D_MODEL), jnp.float32)
    out2, cache2 = causal_transformer_decoder_forward(
        new_tok, packed, nhead=NHEAD, cache=new_cache)
    out2 = jax.block_until_ready(out2)
    cache2 = jax.block_until_ready(cache2)

    out2_ref, cache2_ref = ref_decoder_forward(
        new_tok, layer_params, nhead=NHEAD, cache=cache_ref)
    assert out2.shape == (B, 1, D_MODEL)
    assert cache2.shape == (NUM_LAYERS + 1, B, S + 1, D_MODEL)
    assert jnp.allclose(out2, out2_ref, **TOL)
    assert jnp.allclose(cache2, cache2_ref, **TOL)

    # --- multi batch-tile path (what you'd use on v7x to feed both TensorCores) ---
    out_bb1, cache_bb1 = causal_transformer_decoder_forward(
        tgt, packed, nhead=NHEAD, cache=None, block_b=1)
    out_bb1 = jax.block_until_ready(out_bb1)
    assert jnp.allclose(out_bb1, out_ref, **TOL)
    assert jnp.allclose(cache_bb1, cache_ref, **TOL)

    # --- bf16 weights (MXU-native on v6e/v7x), f32 accumulation / LayerNorm ---
    packed_bf16 = pack_layer_params(layer_params, param_dtype=jnp.bfloat16)

    def _round_weights(p):
        q = dict(p)
        for kk in ("wqkv", "wo", "w1", "w2"):
            q[kk] = p[kk].astype(jnp.bfloat16).astype(jnp.float32)
        return q

    layer_params_bf = [_round_weights(p) for p in layer_params]
    out_bf, cache_bf = causal_transformer_decoder_forward(
        tgt, packed_bf16, nhead=NHEAD, cache=None)
    out_bf = jax.block_until_ready(out_bf)
    out_bf_ref, cache_bf_ref = ref_decoder_forward(
        tgt, layer_params_bf, nhead=NHEAD, cache=None)
    TOL_BF = dict(atol=5e-2, rtol=5e-2)   # bf16 activation casts inside the kernel
    assert jnp.allclose(out_bf, out_bf_ref, **TOL_BF)
    assert jnp.allclose(cache_bf, cache_bf_ref, **TOL_BF)

    print("KERNEL_OK")
</pallas_src>

<mosaic_0001>
module attributes {stable_mosaic.version = 11 : i64} {
  func.func @_fused_layers_kernel(%arg0: i32, %arg1: i32, %arg2: memref<16x32xf32, #tpu.memory_space<vmem>>, %arg3: memref<1x32x32xf32, #tpu.memory_space<vmem>>, %arg4: memref<1x32x32xf32, #tpu.memory_space<vmem>>, %arg5: memref<1x32x32xf32, #tpu.memory_space<vmem>>, %arg6: memref<1x1x32xf32, #tpu.memory_space<vmem>>, %arg7: memref<1x1x32xf32, #tpu.memory_space<vmem>>, %arg8: memref<1x1x32xf32, #tpu.memory_space<vmem>>, %arg9: memref<1x32x32xf32, #tpu.memory_space<vmem>>, %arg10: memref<1x1x32xf32, #tpu.memory_space<vmem>>, %arg11: memref<1x1x32xf32, #tpu.memory_space<vmem>>, %arg12: memref<1x1x32xf32, #tpu.memory_space<vmem>>, %arg13: memref<1x1x32xf32, #tpu.memory_space<vmem>>, %arg14: memref<1x1x32xf32, #tpu.memory_space<vmem>>, %arg15: memref<1x32x64xf32, #tpu.memory_space<vmem>>, %arg16: memref<1x1x64xf32, #tpu.memory_space<vmem>>, %arg17: memref<1x64x32xf32, #tpu.memory_space<vmem>>, %arg18: memref<1x1x32xf32, #tpu.memory_space<vmem>>, %arg19: memref<1x16x32xf32, #tpu.memory_space<vmem>>, %arg20: memref<16x32xf32, #tpu.memory_space<vmem>>, %arg21: memref<16x32xf32, #tpu.memory_space<vmem>>) attributes {dimension_semantics = [#tpu.dimension_semantics<parallel>, #tpu.dimension_semantics<arbitrary>], iteration_bounds = array<i64: 1, 2>, scalar_prefetch = 0 : i64, scratch_operands = 2 : i64, tpu.core_type = #tpu.core_type<tc>, window_params = [{transform_indices = @transform_0, window_bounds = array<i64: 16, 32>}, {transform_indices = @transform_1, window_bounds = array<i64: 1, 32, 32>}, {transform_indices = @transform_2, window_bounds = array<i64: 1, 32, 32>}, {transform_indices = @transform_3, window_bounds = array<i64: 1, 32, 32>}, {transform_indices = @transform_4, window_bounds = array<i64: 1, 1, 32>}, {transform_indices = @transform_5, window_bounds = array<i64: 1, 1, 32>}, {transform_indices = @transform_6, window_bounds = array<i64: 1, 1, 32>}, {transform_indices = @transform_7, window_bounds = array<i64: 1, 32, 32>}, {transform_indices = @transform_8, window_bounds = array<i64: 1, 1, 32>}, {transform_indices = @transform_9, window_bounds = array<i64: 1, 1, 32>}, {transform_indices = @transform_10, window_bounds = array<i64: 1, 1, 32>}, {transform_indices = @transform_11, window_bounds = array<i64: 1, 1, 32>}, {transform_indices = @transform_12, window_bounds = array<i64: 1, 1, 32>}, {transform_indices = @transform_13, window_bounds = array<i64: 1, 32, 64>}, {transform_indices = @transform_14, window_bounds = array<i64: 1, 1, 64>}, {transform_indices = @transform_15, window_bounds = array<i64: 1, 64, 32>}, {transform_indices = @transform_16, window_bounds = array<i64: 1, 1, 32>}, {transform_indices = @transform_17, window_bounds = array<i64: 1, 16, 32>}]} {
    %c0_i32 = arith.constant 0 : i32
    %0 = arith.cmpi eq, %arg1, %c0_i32 : i32
    %1 = arith.extui %0 : i1 to i32
    %c0_i32_0 = arith.constant 0 : i32
    %2 = arith.cmpi ne, %1, %c0_i32_0 : i32
    scf.if %2 {
      %c0_98 = arith.constant 0 : index
      %c0_99 = arith.constant 0 : index
      %186 = vector.load %arg2[%c0_98, %c0_99] : memref<16x32xf32, #tpu.memory_space<vmem>>, vector<16x32xf32>
      %c0_100 = arith.constant 0 : index
      %c0_101 = arith.constant 0 : index
      %187 = vector.load %arg20[%c0_100, %c0_101] : memref<16x32xf32, #tpu.memory_space<vmem>>, vector<16x32xf32>
      tpu.vector_store %arg20[%c0_100, %c0_101], %186 {strides = array<i32>} : memref<16x32xf32, #tpu.memory_space<vmem>>, vector<16x32xf32>,
    } else {
    }
    %c0 = arith.constant 0 : index
    %c0_1 = arith.constant 0 : index
    %3 = vector.load %arg20[%c0, %c0_1] : memref<16x32xf32, #tpu.memory_space<vmem>>, vector<16x32xf32>
    %c0_2 = arith.constant 0 : index
    %c0_3 = arith.constant 0 : index
    %c0_4 = arith.constant 0 : index
    %4 = vector.load %arg3[%c0_2, %c0_3, %c0_4] : memref<1x32x32xf32, #tpu.memory_space<vmem>>, vector<1x32x32xf32>
    %5 = vector.shape_cast %4 : vector<1x32x32xf32> to vector<32x32xf32>
    %cst = arith.constant dense<0.000000e+00> : vector<16x32xf32>
    %6 = tpu.matmul %3, %5, %cst {dimension_numbers = #tpu.dot_dimension_numbers<[1], [0], [0], [1], [0, 0, 1, 1], [], []>} : vector<16x32xf32>, vector<32x32xf32>, vector<16x32xf32> -> vector<16x32xf32>
    %c0_5 = arith.constant 0 : index
    %c0_6 = arith.constant 0 : index
    %c0_7 = arith.constant 0 : index
    %7 = vector.load %arg6[%c0_5, %c0_6, %c0_7] : memref<1x1x32xf32, #tpu.memory_space<vmem>>, vector<1x1x32xf32>
    %8 = vector.shape_cast %7 : vector<1x1x32xf32> to vector<1x32xf32>
    %9 = vector.broadcast %8 : vector<1x32xf32> to vector<16x32xf32>
    %10 = arith.addf %6, %9 : vector<16x32xf32>
    %c0_8 = arith.constant 0 : index
    %c0_9 = arith.constant 0 : index
    %c0_10 = arith.constant 0 : index
    %11 = vector.load %arg4[%c0_8, %c0_9, %c0_10] : memref<1x32x32xf32, #tpu.memory_space<vmem>>, vector<1x32x32xf32>
    %12 = vector.shape_cast %11 : vector<1x32x32xf32> to vector<32x32xf32>
    %cst_11 = arith.constant dense<0.000000e+00> : vector<16x32xf32>
    %13 = tpu.matmul %3, %12, %cst_11 {dimension_numbers = #tpu.dot_dimension_numbers<[1], [0], [0], [1], [0, 0, 1, 1], [], []>} : vector<16x32xf32>, vector<32x32xf32>, vector<16x32xf32> -> vector<16x32xf32>
    %c0_12 = arith.constant 0 : index
    %c0_13 = arith.constant 0 : index
    %c0_14 = arith.constant 0 : index
    %14 = vector.load %arg7[%c0_12, %c0_13, %c0_14] : memref<1x1x32xf32, #tpu.memory_space<vmem>>, vector<1x1x32xf32>
    %15 = vector.shape_cast %14 : vector<1x1x32xf32> to vector<1x32xf32>
    %16 = vector.broadcast %15 : vector<1x32xf32> to vector<16x32xf32>
    %17 = arith.addf %13, %16 : vector<16x32xf32>
    %c0_15 = arith.constant 0 : index
    %c0_16 = arith.constant 0 : index
    %c0_17 = arith.constant 0 : index
    %18 = vector.load %arg5[%c0_15, %c0_16, %c0_17] : memref<1x32x32xf32, #tpu.memory_space<vmem>>, vector<1x32x32xf32>
    %19 = vector.shape_cast %18 : vector<1x32x32xf32> to vector<32x32xf32>
    %cst_18 = arith.constant dense<0.000000e+00> : vector<16x32xf32>
    %20 = tpu.matmul %3, %19, %cst_18 {dimension_numbers = #tpu.dot_dimension_numbers<[1], [0], [0], [1], [0, 0, 1, 1], [], []>} : vector<16x32xf32>, vector<32x32xf32>, vector<16x32xf32> -> vector<16x32xf32>
    %c0_19 = arith.constant 0 : index
    %c0_20 = arith.constant 0 : index
    %c0_21 = arith.constant 0 : index
    %21 = vector.load %arg8[%c0_19, %c0_20, %c0_21] : memref<1x1x32xf32, #tpu.memory_space<vmem>>, vector<1x1x32xf32>
    %22 = vector.shape_cast %21 : vector<1x1x32xf32> to vector<1x32xf32>
    %23 = vector.broadcast %22 : vector<1x32xf32> to vector<16x32xf32>
    %24 = arith.addf %20, %23 : vector<16x32xf32>
    %25 = vector.shape_cast %10 : vector<16x32xf32> to vector<2x8x32xf32>
    %26 = vector.shape_cast %17 : vector<16x32xf32> to vector<2x8x32xf32>
    %27 = vector.shape_cast %24 : vector<16x32xf32> to vector<2x8x32xf32>
    %28 = vector.extract_strided_slice %25 {offsets = [0, 0, 0], sizes = [2, 8, 8], strides = [1, 1, 1]} : vector<2x8x32xf32> to vector<2x8x8xf32>
    %29 = vector.extract_strided_slice %26 {offsets = [0, 0, 0], sizes = [2, 8, 8], strides = [1, 1, 1]} : vector<2x8x32xf32> to vector<2x8x8xf32>
    %30 = vector.extract_strided_slice %27 {offsets = [0, 0, 0], sizes = [2, 8, 8], strides = [1, 1, 1]} : vector<2x8x32xf32> to vector<2x8x8xf32>
    "tpu.trace_start"() <{level = 10 : i32, message = "bqd,bkd->bqk"}> : () -> ()
    %cst_22 = arith.constant dense<0.000000e+00> : vector<2x8x8xf32>
    %31 = tpu.matmul %28, %29, %cst_22 {dimension_numbers = #tpu.dot_dimension_numbers<[2], [2], [1], [1], [0, 0, 0, 1, 1, 1], [0], [0]>} : vector<2x8x8xf32>, vector<2x8x8xf32>, vector<2x8x8xf32> -> vector<2x8x8xf32>
    "tpu.trace_stop"() : () -> ()
    %cst_23 = arith.constant 0.353553385 : f32
    %32 = vector.broadcast %cst_23 : f32 to vector<2x8x8xf32>
    %33 = arith.mulf %31, %32 : vector<2x8x8xf32>
    %cst_24 = arith.constant dense<0xFF800000> : vector<2x8xf32>
    %34 = vector.multi_reduction <maximumf>, %33, %cst_24 [2] : vector<2x8x8xf32> to vector<2x8xf32>
    %35 = vector.shape_cast %34 : vector<2x8xf32> to vector<2x8x1xf32>
    %36 = vector.broadcast %35 : vector<2x8x1xf32> to vector<2x8x8xf32>
    %37 = arith.subf %33, %36 : vector<2x8x8xf32>
    %38 = math.exp %37 : vector<2x8x8xf32>
    %cst_25 = arith.constant dense<0.000000e+00> : vector<2x8xf32>
    %39 = vector.multi_reduction <add>, %38, %cst_25 [2] : vector<2x8x8xf32> to vector<2x8xf32>
    %40 = vector.shape_cast %39 : vector<2x8xf32> to vector<2x8x1xf32>
    "tpu.trace_start"() <{level = 10 : i32, message = "bqk,bkd->bqd"}> : () -> ()
    %cst_26 = arith.constant dense<0.000000e+00> : vector<2x8x8xf32>
    %41 = tpu.matmul %38, %30, %cst_26 {dimension_numbers = #tpu.dot_dimension_numbers<[2], [1], [1], [2], [0, 0, 0, 1, 1, 2], [0], [0]>} : vector<2x8x8xf32>, vector<2x8x8xf32>, vector<2x8x8xf32> -> vector<2x8x8xf32>
    "tpu.trace_stop"() : () -> ()
    %42 = tpu.reciprocal %40 {approx = true} : vector<2x8x1xf32> -> vector<2x8x1xf32>
    %43 = vector.broadcast %42 : vector<2x8x1xf32> to vector<2x8x8xf32>
    %44 = arith.mulf %41, %43 : vector<2x8x8xf32>
    %45 = vector.shape_cast %44 : vector<2x8x8xf32> to vector<16x8xf32>
    %c0_27 = arith.constant 0 : index
    %c0_28 = arith.constant 0 : index
    %46 = vector.load %arg21[%c0_27, %c0_28] : memref<16x32xf32, #tpu.memory_space<vmem>>, vector<16x8xf32>
    tpu.vector_store %arg21[%c0_27, %c0_28], %45 {strides = array<i32>} : memref<16x32xf32, #tpu.memory_space<vmem>>, vector<16x8xf32>,
    %47 = vector.extract_strided_slice %25 {offsets = [0, 0, 8], sizes = [2, 8, 8], strides = [1, 1, 1]} : vector<2x8x32xf32> to vector<2x8x8xf32>
    %48 = vector.extract_strided_slice %26 {offsets = [0, 0, 8], sizes = [2, 8, 8], strides = [1, 1, 1]} : vector<2x8x32xf32> to vector<2x8x8xf32>
    %49 = vector.extract_strided_slice %27 {offsets = [0, 0, 8], sizes = [2, 8, 8], strides = [1, 1, 1]} : vector<2x8x32xf32> to vector<2x8x8xf32>
    "tpu.trace_start"() <{level = 10 : i32, message = "bqd,bkd->bqk"}> : () -> ()
    %cst_29 = arith.constant dense<0.000000e+00> : vector<2x8x8xf32>
    %50 = tpu.matmul %47, %48, %cst_29 {dimension_numbers = #tpu.dot_dimension_numbers<[2], [2], [1], [1], [0, 0, 0, 1, 1, 1], [0], [0]>} : vector<2x8x8xf32>, vector<2x8x8xf32>, vector<2x8x8xf32> -> vector<2x8x8xf32>
    "tpu.trace_stop"() : () -> ()
    %cst_30 = arith.constant 0.353553385 : f32
    %51 = vector.broadcast %cst_30 : f32 to vector<2x8x8xf32>
    %52 = arith.mulf %50, %51 : vector<2x8x8xf32>
    %cst_31 = arith.constant dense<0xFF800000> : vector<2x8xf32>
    %53 = vector.multi_reduction <maximumf>, %52, %cst_31 [2] : vector<2x8x8xf32> to vector<2x8xf32>
    %54 = vector.shape_cast %53 : vector<2x8xf32> to vector<2x8x1xf32>
    %55 = vector.broadcast %54 : vector<2x8x1xf32> to vector<2x8x8xf32>
    %56 = arith.subf %52, %55 : vector<2x8x8xf32>
    %57 = math.exp %56 : vector<2x8x8xf32>
    %cst_32 = arith.constant dense<0.000000e+00> : vector<2x8xf32>
    %58 = vector.multi_reduction <add>, %57, %cst_32 [2] : vector<2x8x8xf32> to vector<2x8xf32>
    %59 = vector.shape_cast %58 : vector<2x8xf32> to vector<2x8x1xf32>
    "tpu.trace_start"() <{level = 10 : i32, message = "bqk,bkd->bqd"}> : () -> ()
    %cst_33 = arith.constant dense<0.000000e+00> : vector<2x8x8xf32>
    %60 = tpu.matmul %57, %49, %cst_33 {dimension_numbers = #tpu.dot_dimension_numbers<[2], [1], [1], [2], [0, 0, 0, 1, 1, 2], [0], [0]>} : vector<2x8x8xf32>, vector<2x8x8xf32>, vector<2x8x8xf32> -> vector<2x8x8xf32>
    "tpu.trace_stop"() : () -> ()
    %61 = tpu.reciprocal %59 {approx = true} : vector<2x8x1xf32> -> vector<2x8x1xf32>
    %62 = vector.broadcast %61 : vector<2x8x1xf32> to vector<2x8x8xf32>
    %63 = arith.mulf %60, %62 : vector<2x8x8xf32>
    %64 = vector.shape_cast %63 : vector<2x8x8xf32> to vector<16x8xf32>
    %c0_34 = arith.constant 0 : index
    %c8 = arith.constant 8 : index
    %65 = vector.load %arg21[%c0_34, %c8] : memref<16x32xf32, #tpu.memory_space<vmem>>, vector<16x8xf32>
    tpu.vector_store %arg21[%c0_34, %c8], %64 {strides = array<i32>} : memref<16x32xf32, #tpu.memory_space<vmem>>, vector<16x8xf32>,
    %66 = vector.extract_strided_slice %25 {offsets = [0, 0, 16], sizes = [2, 8, 8], strides = [1, 1, 1]} : vector<2x8x32xf32> to vector<2x8x8xf32>
    %67 = vector.extract_strided_slice %26 {offsets = [0, 0, 16], sizes = [2, 8, 8], strides = [1, 1, 1]} : vector<2x8x32xf32> to vector<2x8x8xf32>
    %68 = vector.extract_strided_slice %27 {offsets = [0, 0, 16], sizes = [2, 8, 8], strides = [1, 1, 1]} : vector<2x8x32xf32> to vector<2x8x8xf32>
    "tpu.trace_start"() <{level = 10 : i32, message = "bqd,bkd->bqk"}> : () -> ()
    %cst_35 = arith.constant dense<0.000000e+00> : vector<2x8x8xf32>
    %69 = tpu.matmul %66, %67, %cst_35 {dimension_numbers = #tpu.dot_dimension_numbers<[2], [2], [1], [1], [0, 0, 0, 1, 1, 1], [0], [0]>} : vector<2x8x8xf32>, vector<2x8x8xf32>, vector<2x8x8xf32> -> vector<2x8x8xf32>
    "tpu.trace_stop"() : () -> ()
    %cst_36 = arith.constant 0.353553385 : f32
    %70 = vector.broadcast %cst_36 : f32 to vector<2x8x8xf32>
    %71 = arith.mulf %69, %70 : vector<2x8x8xf32>
    %cst_37 = arith.constant dense<0xFF800000> : vector<2x8xf32>
    %72 = vector.multi_reduction <maximumf>, %71, %cst_37 [2] : vector<2x8x8xf32> to vector<2x8xf32>
    %73 = vector.shape_cast %72 : vector<2x8xf32> to vector<2x8x1xf32>
    %74 = vector.broadcast %73 : vector<2x8x1xf32> to vector<2x8x8xf32>
    %75 = arith.subf %71, %74 : vector<2x8x8xf32>
    %76 = math.exp %75 : vector<2x8x8xf32>
    %cst_38 = arith.constant dense<0.000000e+00> : vector<2x8xf32>
    %77 = vector.multi_reduction <add>, %76, %cst_38 [2] : vector<2x8x8xf32> to vector<2x8xf32>
    %78 = vector.shape_cast %77 : vector<2x8xf32> to vector<2x8x1xf32>
    "tpu.trace_start"() <{level = 10 : i32, message = "bqk,bkd->bqd"}> : () -> ()
    %cst_39 = arith.constant dense<0.000000e+00> : vector<2x8x8xf32>
    %79 = tpu.matmul %76, %68, %cst_39 {dimension_numbers = #tpu.dot_dimension_numbers<[2], [1], [1], [2], [0, 0, 0, 1, 1, 2], [0], [0]>} : vector<2x8x8xf32>, vector<2x8x8xf32>, vector<2x8x8xf32> -> vector<2x8x8xf32>
    "tpu.trace_stop"() : () -> ()
    %80 = tpu.reciprocal %78 {approx = true} : vector<2x8x1xf32> -> vector<2x8x1xf32>
    %81 = vector.broadcast %80 : vector<2x8x1xf32> to vector<2x8x8xf32>
    %82 = arith.mulf %79, %81 : vector<2x8x8xf32>
    %83 = vector.shape_cast %82 : vector<2x8x8xf32> to vector<16x8xf32>
    %c0_40 = arith.constant 0 : index
    %c16 = arith.constant 16 : index
    %84 = vector.load %arg21[%c0_40, %c16] : memref<16x32xf32, #tpu.memory_space<vmem>>, vector<16x8xf32>
    tpu.vector_store %arg21[%c0_40, %c16], %83 {strides = array<i32>} : memref<16x32xf32, #tpu.memory_space<vmem>>, vector<16x8xf32>,
    %85 = vector.extract_strided_slice %25 {offsets = [0, 0, 24], sizes = [2, 8, 8], strides = [1, 1, 1]} : vector<2x8x32xf32> to vector<2x8x8xf32>
    %86 = vector.extract_strided_slice %26 {offsets = [0, 0, 24], sizes = [2, 8, 8], strides = [1, 1, 1]} : vector<2x8x32xf32> to vector<2x8x8xf32>
    %87 = vector.extract_strided_slice %27 {offsets = [0, 0, 24], sizes = [2, 8, 8], strides = [1, 1, 1]} : vector<2x8x32xf32> to vector<2x8x8xf32>
    "tpu.trace_start"() <{level = 10 : i32, message = "bqd,bkd->bqk"}> : () -> ()
    %cst_41 = arith.constant dense<0.000000e+00> : vector<2x8x8xf32>
    %88 = tpu.matmul %85, %86, %cst_41 {dimension_numbers = #tpu.dot_dimension_numbers<[2], [2], [1], [1], [0, 0, 0, 1, 1, 1], [0], [0]>} : vector<2x8x8xf32>, vector<2x8x8xf32>, vector<2x8x8xf32> -> vector<2x8x8xf32>
    "tpu.trace_stop"() : () -> ()
    %cst_42 = arith.constant 0.353553385 : f32
    %89 = vector.broadcast %cst_42 : f32 to vector<2x8x8xf32>
    %90 = arith.mulf %88, %89 : vector<2x8x8xf32>
    %cst_43 = arith.constant dense<0xFF800000> : vector<2x8xf32>
    %91 = vector.multi_reduction <maximumf>, %90, %cst_43 [2] : vector<2x8x8xf32> to vector<2x8xf32>
    %92 = vector.shape_cast %91 : vector<2x8xf32> to vector<2x8x1xf32>
    %93 = vector.broadcast %92 : vector<2x8x1xf32> to vector<2x8x8xf32>
    %94 = arith.subf %90, %93 : vector<2x8x8xf32>
    %95 = math.exp %94 : vector<2x8x8xf32>
    %cst_44 = arith.constant dense<0.000000e+00> : vector<2x8xf32>
    %96 = vector.multi_reduction <add>, %95, %cst_44 [2] : vector<2x8x8xf32> to vector<2x8xf32>
    %97 = vector.shape_cast %96 : vector<2x8xf32> to vector<2x8x1xf32>
    "tpu.trace_start"() <{level = 10 : i32, message = "bqk,bkd->bqd"}> : () -> ()
    %cst_45 = arith.constant dense<0.000000e+00> : vector<2x8x8xf32>
    %98 = tpu.matmul %95, %87, %cst_45 {dimension_numbers = #tpu.dot_dimension_numbers<[2], [1], [1], [2], [0, 0, 0, 1, 1, 2], [0], [0]>} : vector<2x8x8xf32>, vector<2x8x8xf32>, vector<2x8x8xf32> -> vector<2x8x8xf32>
    "tpu.trace_stop"() : () -> ()
    %99 = tpu.reciprocal %97 {approx = true} : vector<2x8x1xf32> -> vector<2x8x1xf32>
    %100 = vector.broadcast %99 : vector<2x8x1xf32> to vector<2x8x8xf32>
    %101 = arith.mulf %98, %100 : vector<2x8x8xf32>
    %102 = vector.shape_cast %101 : vector<2x8x8xf32> to vector<16x8xf32>
    %c0_46 = arith.constant 0 : index
    %c24 = arith.constant 24 : index
    %103 = vector.load %arg21[%c0_46, %c24] : memref<16x32xf32, #tpu.memory_space<vmem>>, vector<16x8xf32>
    tpu.vector_store %arg21[%c0_46, %c24], %102 {strides = array<i32>} : memref<16x32xf32, #tpu.memory_space<vmem>>, vector<16x8xf32>,
    %c0_47 = arith.constant 0 : index
    %c0_48 = arith.constant 0 : index
    %104 = vector.load %arg21[%c0_47, %c0_48] : memref<16x32xf32, #tpu.memory_space<vmem>>, vector<16x32xf32>
    %c0_49 = arith.constant 0 : index
    %c0_50 = arith.constant 0 : index
    %c0_51 = arith.constant 0 : index
    %105 = vector.load %arg9[%c0_49, %c0_50, %c0_51] : memref<1x32x32xf32, #tpu.memory_space<vmem>>, vector<1x32x32xf32>
    %106 = vector.shape_cast %105 : vector<1x32x32xf32> to vector<32x32xf32>
    %cst_52 = arith.constant dense<0.000000e+00> : vector<16x32xf32>
    %107 = tpu.matmul %104, %106, %cst_52 {dimension_numbers = #tpu.dot_dimension_numbers<[1], [0], [0], [1], [0, 0, 1, 1], [], []>} : vector<16x32xf32>, vector<32x32xf32>, vector<16x32xf32> -> vector<16x32xf32>
    %c0_53 = arith.constant 0 : index
    %c0_54 = arith.constant 0 : index
    %c0_55 = arith.constant 0 : index
    %108 = vector.load %arg10[%c0_53, %c0_54, %c0_55] : memref<1x1x32xf32, #tpu.memory_space<vmem>>, vector<1x1x32xf32>
    %109 = vector.shape_cast %108 : vector<1x1x32xf32> to vector<1x32xf32>
    %110 = vector.broadcast %109 : vector<1x32xf32> to vector<16x32xf32>
    %111 = arith.addf %107, %110 : vector<16x32xf32>
    %112 = arith.addf %3, %111 : vector<16x32xf32>
    %cst_56 = arith.constant dense<0.000000e+00> : vector<16xf32>
    %113 = vector.multi_reduction <add>, %112, %cst_56 [1] : vector<16x32xf32> to vector<16xf32>
    %114 = vector.shape_cast %113 : vector<16xf32> to vector<16x1xf32>
    %cst_57 = arith.constant 3.200000e+01 : f32
    %115 = vector.broadcast %cst_57 : f32 to vector<16x1xf32>
    %116 = arith.divf %114, %115 : vector<16x1xf32>
    %117 = vector.broadcast %116 : vector<16x1xf32> to vector<16x32xf32>
    %118 = arith.subf %112, %117 : vector<16x32xf32>
    %119 = arith.mulf %118, %118 : vector<16x32xf32>
    %cst_58 = arith.constant dense<0.000000e+00> : vector<16xf32>
    %120 = vector.multi_reduction <add>, %119, %cst_58 [1] : vector<16x32xf32> to vector<16xf32>
    %121 = vector.shape_cast %120 : vector<16xf32> to vector<16x1xf32>
    %cst_59 = arith.constant 3.200000e+01 : f32
    %122 = vector.broadcast %cst_59 : f32 to vector<16x1xf32>
    %123 = arith.divf %121, %122 : vector<16x1xf32>
    %124 = vector.broadcast %116 : vector<16x1xf32> to vector<16x32xf32>
    %125 = arith.subf %112, %124 : vector<16x32xf32>
    %cst_60 = arith.constant 9.99999974E-6 : f32
    %126 = vector.broadcast %cst_60 : f32 to vector<16x1xf32>
    %127 = arith.addf %123, %126 : vector<16x1xf32>
    %128 = math.rsqrt %127 : vector<16x1xf32>
    %129 = vector.broadcast %128 : vector<16x1xf32> to vector<16x32xf32>
    %130 = arith.mulf %125, %129 : vector<16x32xf32>
    %c0_61 = arith.constant 0 : index
    %c0_62 = arith.constant 0 : index
    %c0_63 = arith.constant 0 : index
    %131 = vector.load %arg11[%c0_61, %c0_62, %c0_63] : memref<1x1x32xf32, #tpu.memory_space<vmem>>, vector<1x1x32xf32>
    %132 = vector.shape_cast %131 : vector<1x1x32xf32> to vector<1x32xf32>
    %133 = vector.broadcast %132 : vector<1x32xf32> to vector<16x32xf32>
    %134 = arith.mulf %130, %133 : vector<16x32xf32>
    %c0_64 = arith.constant 0 : index
    %c0_65 = arith.constant 0 : index
    %c0_66 = arith.constant 0 : index
    %135 = vector.load %arg12[%c0_64, %c0_65, %c0_66] : memref<1x1x32xf32, #tpu.memory_space<vmem>>, vector<1x1x32xf32>
    %136 = vector.shape_cast %135 : vector<1x1x32xf32> to vector<1x32xf32>
    %137 = vector.broadcast %136 : vector<1x32xf32> to vector<16x32xf32>
    %138 = arith.addf %134, %137 : vector<16x32xf32>
    %c0_67 = arith.constant 0 : index
    %c0_68 = arith.constant 0 : index
    %c0_69 = arith.constant 0 : index
    %139 = vector.load %arg15[%c0_67, %c0_68, %c0_69] : memref<1x32x64xf32, #tpu.memory_space<vmem>>, vector<1x32x64xf32>
    %140 = vector.shape_cast %139 : vector<1x32x64xf32> to vector<32x64xf32>
    %cst_70 = arith.constant dense<0.000000e+00> : vector<16x64xf32>
    %141 = tpu.matmul %138, %140, %cst_70 {dimension_numbers = #tpu.dot_dimension_numbers<[1], [0], [0], [1], [0, 0, 1, 1], [], []>} : vector<16x32xf32>, vector<32x64xf32>, vector<16x64xf32> -> vector<16x64xf32>
    %c0_71 = arith.constant 0 : index
    %c0_72 = arith.constant 0 : index
    %c0_73 = arith.constant 0 : index
    %142 = vector.load %arg16[%c0_71, %c0_72, %c0_73] : memref<1x1x64xf32, #tpu.memory_space<vmem>>, vector<1x1x64xf32>
    %143 = vector.shape_cast %142 : vector<1x1x64xf32> to vector<1x64xf32>
    %144 = vector.broadcast %143 : vector<1x64xf32> to vector<16x64xf32>
    %145 = arith.addf %141, %144 : vector<16x64xf32>
    %cst_74 = arith.constant 0.000000e+00 : f32
    %146 = vector.broadcast %cst_74 : f32 to vector<16x64xf32>
    %147 = arith.maximumf %145, %146 : vector<16x64xf32>
    %c0_75 = arith.constant 0 : index
    %c0_76 = arith.constant 0 : index
    %c0_77 = arith.constant 0 : index
    %148 = vector.load %arg17[%c0_75, %c0_76, %c0_77] : memref<1x64x32xf32, #tpu.memory_space<vmem>>, vector<1x64x32xf32>
    %149 = vector.shape_cast %148 : vector<1x64x32xf32> to vector<64x32xf32>
    %cst_78 = arith.constant dense<0.000000e+00> : vector<16x32xf32>
    %150 = tpu.matmul %147, %149, %cst_78 {dimension_numbers = #tpu.dot_dimension_numbers<[1], [0], [0], [1], [0, 0, 1, 1], [], []>} : vector<16x64xf32>, vector<64x32xf32>, vector<16x32xf32> -> vector<16x32xf32>
    %c0_79 = arith.constant 0 : index
    %c0_80 = arith.constant 0 : index
    %c0_81 = arith.constant 0 : index
    %151 = vector.load %arg18[%c0_79, %c0_80, %c0_81] : memref<1x1x32xf32, #tpu.memory_space<vmem>>, vector<1x1x32xf32>
    %152 = vector.shape_cast %151 : vector<1x1x32xf32> to vector<1x32xf32>
    %153 = vector.broadcast %152 : vector<1x32xf32> to vector<16x32xf32>
    %154 = arith.addf %150, %153 : vector<16x32xf32>
    %155 = arith.addf %138, %154 : vector<16x32xf32>
    %cst_82 = arith.constant dense<0.000000e+00> : vector<16xf32>
    %156 = vector.multi_reduction <add>, %155, %cst_82 [1] : vector<16x32xf32> to vector<16xf32>
    %157 = vector.shape_cast %156 : vector<16xf32> to vector<16x1xf32>
    %cst_83 = arith.constant 3.200000e+01 : f32
    %158 = vector.broadcast %cst_83 : f32 to vector<16x1xf32>
    %159 = arith.divf %157, %158 : vector<16x1xf32>
    %160 = vector.broadcast %159 : vector<16x1xf32> to vector<16x32xf32>
    %161 = arith.subf %155, %160 : vector<16x32xf32>
    %162 = arith.mulf %161, %161 : vector<16x32xf32>
    %cst_84 = arith.constant dense<0.000000e+00> : vector<16xf32>
    %163 = vector.multi_reduction <add>, %162, %cst_84 [1] : vector<16x32xf32> to vector<16xf32>
    %164 = vector.shape_cast %163 : vector<16xf32> to vector<16x1xf32>
    %cst_85 = arith.constant 3.200000e+01 : f32
    %165 = vector.broadcast %cst_85 : f32 to vector<16x1xf32>
    %166 = arith.divf %164, %165 : vector<16x1xf32>
    %167 = vector.broadcast %159 : vector<16x1xf32> to vector<16x32xf32>
    %168 = arith.subf %155, %167 : vector<16x32xf32>
    %cst_86 = arith.constant 9.99999974E-6 : f32
    %169 = vector.broadcast %cst_86 : f32 to vector<16x1xf32>
    %170 = arith.addf %166, %169 : vector<16x1xf32>
    %171 = math.rsqrt %170 : vector<16x1xf32>
    %172 = vector.broadcast %171 : vector<16x1xf32> to vector<16x32xf32>
    %173 = arith.mulf %168, %172 : vector<16x32xf32>
    %c0_87 = arith.constant 0 : index
    %c0_88 = arith.constant 0 : index
    %c0_89 = arith.constant 0 : index
    %174 = vector.load %arg13[%c0_87, %c0_88, %c0_89] : memref<1x1x32xf32, #tpu.memory_space<vmem>>, vector<1x1x32xf32>
    %175 = vector.shape_cast %174 : vector<1x1x32xf32> to vector<1x32xf32>
    %176 = vector.broadcast %175 : vector<1x32xf32> to vector<16x32xf32>
    %177 = arith.mulf %173, %176 : vector<16x32xf32>
    %c0_90 = arith.constant 0 : index
    %c0_91 = arith.constant 0 : index
    %c0_92 = arith.constant 0 : index
    %178 = vector.load %arg14[%c0_90, %c0_91, %c0_92] : memref<1x1x32xf32, #tpu.memory_space<vmem>>, vector<1x1x32xf32>
    %179 = vector.shape_cast %178 : vector<1x1x32xf32> to vector<1x32xf32>
    %180 = vector.broadcast %179 : vector<1x32xf32> to vector<16x32xf32>
    %181 = arith.addf %177, %180 : vector<16x32xf32>
    %c0_93 = arith.constant 0 : index
    %c0_94 = arith.constant 0 : index
    %182 = vector.load %arg20[%c0_93, %c0_94] : memref<16x32xf32, #tpu.memory_space<vmem>>, vector<16x32xf32>
    tpu.vector_store %arg20[%c0_93, %c0_94], %181 {strides = array<i32>} : memref<16x32xf32, #tpu.memory_space<vmem>>, vector<16x32xf32>,
    %c0_95 = arith.constant 0 : index
    %c0_96 = arith.constant 0 : index
    %c0_97 = arith.constant 0 : index
    %183 = vector.load %arg19[%c0_95, %c0_96, %c0_97] : memref<1x16x32xf32, #tpu.memory_space<vmem>>, vector<1x16x32xf32>
    %184 = vector.shape_cast %183 : vector<1x16x32xf32> to vector<16x32xf32>
    %185 = vector.shape_cast %181 : vector<16x32xf32> to vector<1x16x32xf32>
    tpu.vector_store %arg19[%c0_95, %c0_96, %c0_97], %185 {strides = array<i32>} : memref<1x16x32xf32, #tpu.memory_space<vmem>>, vector<1x16x32xf32>,
    return
  }
  func.func @transform_0(%arg0: i32, %arg1: i32) -> (i32, i32) {
    %c0_i32 = arith.constant 0 : i32
    %c0_i32_0 = arith.constant 0 : i32
    return %arg0, %c0_i32 : i32, i32
  }
  func.func @transform_1(%arg0: i32, %arg1: i32) -> (i32, i32, i32) {
    %c0_i32 = arith.constant 0 : i32
    %c0_i32_0 = arith.constant 0 : i32
    %c0_i32_1 = arith.constant 0 : i32
    return %arg1, %c0_i32, %c0_i32_0 : i32, i32, i32
  }
  func.func @transform_2(%arg0: i32, %arg1: i32) -> (i32, i32, i32) {
    %c0_i32 = arith.constant 0 : i32
    %c0_i32_0 = arith.constant 0 : i32
    %c0_i32_1 = arith.constant 0 : i32
    return %arg1, %c0_i32, %c0_i32_0 : i32, i32, i32
  }
  func.func @transform_3(%arg0: i32, %arg1: i32) -> (i32, i32, i32) {
    %c0_i32 = arith.constant 0 : i32
    %c0_i32_0 = arith.constant 0 : i32
    %c0_i32_1 = arith.constant 0 : i32
    return %arg1, %c0_i32, %c0_i32_0 : i32, i32, i32
  }
  func.func @transform_4(%arg0: i32, %arg1: i32) -> (i32, i32, i32) {
    %c0_i32 = arith.constant 0 : i32
    %c0_i32_0 = arith.constant 0 : i32
    %c0_i32_1 = arith.constant 0 : i32
    return %arg1, %c0_i32, %c0_i32_0 : i32, i32, i32
  }
  func.func @transform_5(%arg0: i32, %arg1: i32) -> (i32, i32, i32) {
    %c0_i32 = arith.constant 0 : i32
    %c0_i32_0 = arith.constant 0 : i32
    %c0_i32_1 = arith.constant 0 : i32
    return %arg1, %c0_i32, %c0_i32_0 : i32, i32, i32
  }
  func.func @transform_6(%arg0: i32, %arg1: i32) -> (i32, i32, i32) {
    %c0_i32 = arith.constant 0 : i32
    %c0_i32_0 = arith.constant 0 : i32
    %c0_i32_1 = arith.constant 0 : i32
    return %arg1, %c0_i32, %c0_i32_0 : i32, i32, i32
  }
  func.func @transform_7(%arg0: i32, %arg1: i32) -> (i32, i32, i32) {
    %c0_i32 = arith.constant 0 : i32
    %c0_i32_0 = arith.constant 0 : i32
    %c0_i32_1 = arith.constant 0 : i32
    return %arg1, %c0_i32, %c0_i32_0 : i32, i32, i32
  }
  func.func @transform_8(%arg0: i32, %arg1: i32) -> (i32, i32, i32) {
    %c0_i32 = arith.constant 0 : i32
    %c0_i32_0 = arith.constant 0 : i32
    %c0_i32_1 = arith.constant 0 : i32
    return %arg1, %c0_i32, %c0_i32_0 : i32, i32, i32
  }
  func.func @transform_9(%arg0: i32, %arg1: i32) -> (i32, i32, i32) {
    %c0_i32 = arith.constant 0 : i32
    %c0_i32_0 = arith.constant 0 : i32
    %c0_i32_1 = arith.constant 0 : i32
    return %arg1, %c0_i32, %c0_i32_0 : i32, i32, i32
  }
  func.func @transform_10(%arg0: i32, %arg1: i32) -> (i32, i32, i32) {
    %c0_i32 = arith.constant 0 : i32
    %c0_i32_0 = arith.constant 0 : i32
    %c0_i32_1 = arith.constant 0 : i32
    return %arg1, %c0_i32, %c0_i32_0 : i32, i32, i32
  }
  func.func @transform_11(%arg0: i32, %arg1: i32) -> (i32, i32, i32) {
    %c0_i32 = arith.constant 0 : i32
    %c0_i32_0 = arith.constant 0 : i32
    %c0_i32_1 = arith.constant 0 : i32
    return %arg1, %c0_i32, %c0_i32_0 : i32, i32, i32
  }
  func.func @transform_12(%arg0: i32, %arg1: i32) -> (i32, i32, i32) {
    %c0_i32 = arith.constant 0 : i32
    %c0_i32_0 = arith.constant 0 : i32
    %c0_i32_1 = arith.constant 0 : i32
    return %arg1, %c0_i32, %c0_i32_0 : i32, i32, i32
  }
  func.func @transform_13(%arg0: i32, %arg1: i32) -> (i32, i32, i32) {
    %c0_i32 = arith.constant 0 : i32
    %c0_i32_0 = arith.constant 0 : i32
    %c0_i32_1 = arith.constant 0 : i32
    return %arg1, %c0_i32, %c0_i32_0 : i32, i32, i32
  }
  func.func @transform_14(%arg0: i32, %arg1: i32) -> (i32, i32, i32) {
    %c0_i32 = arith.constant 0 : i32
    %c0_i32_0 = arith.constant 0 : i32
    %c0_i32_1 = arith.constant 0 : i32
    return %arg1, %c0_i32, %c0_i32_0 : i32, i32, i32
  }
  func.func @transform_15(%arg0: i32, %arg1: i32) -> (i32, i32, i32) {
    %c0_i32 = arith.constant 0 : i32
    %c0_i32_0 = arith.constant 0 : i32
    %c0_i32_1 = arith.constant 0 : i32
    return %arg1, %c0_i32, %c0_i32_0 : i32, i32, i32
  }
  func.func @transform_16(%arg0: i32, %arg1: i32) -> (i32, i32, i32) {
    %c0_i32 = arith.constant 0 : i32
    %c0_i32_0 = arith.constant 0 : i32
    %c0_i32_1 = arith.constant 0 : i32
    return %arg1, %c0_i32, %c0_i32_0 : i32, i32, i32
  }
  func.func @transform_17(%arg0: i32, %arg1: i32) -> (i32, i32, i32) {
    %c0_i32 = arith.constant 0 : i32
    %c0_i32_0 = arith.constant 0 : i32
    return %arg1, %arg0, %c0_i32 : i32, i32, i32
  }
}

</mosaic_0001>

<llo_original>
// kernel: tpu_custom_call.1
$region0: #{tpu_custom_call.1}
  #allocation0 [shape = 'u32[]', space=smem, size = 0x4, offset = 0x4, fixed_abs, tag = 'smem constant byte address 0x4 - core index']
  #allocation1 [shape = 'u32[72,128]{1,0:T(1,128)}', space=vmem, size = 0x9000, scoped, tag = 'internal scratch']
  #allocation2 [shape = 'f32[16,32]{1,0:T(8,128)}', space=vmem, size = 0x2000, scoped, tag = 'scratch operand']
  #allocation3 [shape = 'f32[16,32]{1,0:T(8,128)}', space=vmem, size = 0x2000, scoped, tag = 'scratch operand']
  %s0 = inlined_call_operand.hbm [shape: f32[16,32], index: 0, kind: input, shape index: {}]
  %s1 = inlined_call_operand.vmem [shape: f32[2,32,32], index: 1, kind: input, shape index: {}]
  %s2 = inlined_call_operand.vmem [shape: f32[2,32,32], index: 2, kind: input, shape index: {}]
  %s3 = inlined_call_operand.vmem [shape: f32[2,32,32], index: 3, kind: input, shape index: {}]
  %s4 = inlined_call_operand.vmem [shape: f32[2,1,32], index: 4, kind: input, shape index: {}]
  %s5 = inlined_call_operand.hbm [shape: f32[2,1,32], index: 5, kind: input, shape index: {}]
  %s6 = inlined_call_operand.vmem [shape: f32[2,1,32], index: 6, kind: input, shape index: {}]
  %s7 = inlined_call_operand.hbm [shape: f32[2,32,32], index: 7, kind: input, shape index: {}]
  %s8 = inlined_call_operand.hbm [shape: f32[2,1,32], index: 8, kind: input, shape index: {}]
  %s9 = inlined_call_operand.vmem [shape: f32[2,1,32], index: 9, kind: input, shape index: {}]
  %s10 = inlined_call_operand.vmem [shape: f32[2,1,32], index: 10, kind: input, shape index: {}]
  %s11 = inlined_call_operand.hbm [shape: f32[2,1,32], index: 11, kind: input, shape index: {}]
  %s12 = inlined_call_operand.vmem [shape: f32[2,1,32], index: 12, kind: input, shape index: {}]
  %s13 = inlined_call_operand.hbm [shape: f32[2,32,64], index: 13, kind: input, shape index: {}]
  %s14 = inlined_call_operand.hbm [shape: f32[2,1,64], index: 14, kind: input, shape index: {}]
  %s15 = inlined_call_operand.vmem [shape: f32[2,64,32], index: 15, kind: input, shape index: {}]
  %s16 = inlined_call_operand.vmem [shape: f32[2,1,32], index: 16, kind: input, shape index: {}]
  %s17 = inlined_call_operand.hbm [shape: f32[2,16,32], index: 17, kind: output, shape index: {}]
  %s18 = sld [smem:[#allocation0]]
  $region133: #{tpu_custom_call.1} parent=0
    _
  %s20 = ssub.s32 1, %s18
  %s21 = scalar_select 0, %s20, %s18
  $region1: #{tpu_custom_call.1} parent=0
    #allocation4 [shape = 'u8[8192]{0}', space=vmem, size = 0x2000, scoped, tag = 'input window, operand 0, single buffered']
    #allocation5 [shape = 's32[2]{0}', space=sflag, size = 0x8, scoped, tag = 'scoped memory for tpu_custom_call.1']
    #allocation6 [shape = 's32[2]{0}', space=sflag, size = 0x8, scoped, tag = 'scoped memory for tpu_custom_call.1']
    #allocation7 [shape = 'u8[1024]{0}', space=vmem, size = 0x400, scoped, tag = 'input window, operand 5']
    #allocation8 [shape = 's32[2]{0}', space=sflag, size = 0x8, scoped, tag = 'scoped memory for tpu_custom_call.1']
    #allocation9 [shape = 'u8[32768]{0}', space=vmem, size = 0x8000, scoped, tag = 'input window, operand 7']
    #allocation10 [shape = 'u8[1024]{0}', space=vmem, size = 0x400, scoped, tag = 'input window, operand 8']
    #allocation11 [shape = 's32[2]{0}', space=sflag, size = 0x8, scoped, tag = 'scoped memory for tpu_custom_call.1']
    #allocation12 [shape = 'u8[1024]{0}', space=vmem, size = 0x400, scoped, tag = 'input window, operand 11']
    #allocation13 [shape = 'u8[32768]{0}', space=vmem, size = 0x8000, scoped, tag = 'input window, operand 13']
    #allocation14 [shape = 's32[2]{0}', space=sflag, size = 0x8, scoped, tag = 'scoped memory for tpu_custom_call.1']
    #allocation15 [shape = 'u8[1024]{0}', space=vmem, size = 0x400, scoped, tag = 'input window, operand 14']
    #allocation16 [shape = 'u8[16384]{0}', space=vmem, size = 0x4000, scoped, tag = 'output window, operand 0']
    %22 = vsyncpa [#allocation5], 0
    %23 = vsyncpa [#allocation8], 0
    %s24 = scalar_lea.sflag [#allocation8], 1
    %25 = vsyncpa %s24, 0
    %26 = vsyncpa [#allocation11], 0
    %s27 = scalar_lea.sflag [#allocation11], 1
    %28 = vsyncpa %s27, 0
    %29 = vsyncpa [#allocation14], 0
    %s30 = scalar_lea.sflag [#allocation14], 1
    %31 = vsyncpa %s30, 0
    %32 = vsyncpa [#allocation6], 0
    %s33 = scalar_lea.sflag [#allocation6], 1
    %34 = vsyncpa %s33, 0
    loop: start=0, step=1, limit=4
    $region2: #{tpu_custom_call.1} parent=1 // loop_pre_header
      _
    $region3: #{tpu_custom_call.1} parent=1 // loop_header
      %s36 = sphi 0, %s40
      %p37 = scmp.ge.s32.totalorder %s36, 4
      %s43 = sphi 0, %s55
      %s44 = sphi 0, %s51
      %s45 = sphi 0, %s43
      %s46 = sphi 0, %s44
      %s47 = sphi 0, %s45
      %s48 = sphi 0, %s46
      %s58 = sphi 0, %s60
      %s61 = sphi 0, %s58
      %s62 = sphi 0, %s61
      %s78 = sphi 0, %s62
      %s84 = sphi 0, %s86
      %s87 = sphi 0, %s84
      %s88 = sphi 0, %s87
      %s104 = sphi 0, %s88
      %s110 = sphi 0, %s112
      %s113 = sphi 0, %s110
      %s114 = sphi 0, %s113
      %s130 = sphi 0, %s114
      %s136 = sphi 0, %s138
      %s139 = sphi 0, %s136
      %s140 = sphi 0, %s139
      %s156 = sphi 0, %s140
      %s162 = sphi 0, %s164
      %s165 = sphi 0, %s162
      %s166 = sphi 0, %s165
      %s182 = sphi 0, %s166
      %s188 = sphi 0, %s190
      %s191 = sphi 0, %s188
      %s192 = sphi 0, %s191
      %s208 = sphi 0, %s192
      %s214 = sphi 0, %s216
      %s217 = sphi 0, %s214
      %s218 = sphi 0, %s217
      %s234 = sphi 0, %s218
      %s240 = sphi 0, %s242
      %s243 = sphi 0, %s240
      %s244 = sphi 0, %s243
      %s260 = sphi 0, %s244
      %s266 = sphi 0, %s268
      %s269 = sphi 0, %s266
      %s270 = sphi 0, %s269
      %s286 = sphi 0, %s270
      %s292 = sphi 0, %s294
      %s295 = sphi 0, %s292
      %s296 = sphi 0, %s295
      %s312 = sphi 0, %s296
      %s318 = sphi 0, %s320
      %s321 = sphi 0, %s318
      %s322 = sphi 0, %s321
      %s338 = sphi 0, %s322
      %s344 = sphi 0, %s346
      %s347 = sphi 0, %s344
      %s348 = sphi 0, %s347
      %s364 = sphi 0, %s348
      %s370 = sphi 0, %s372
      %s373 = sphi 0, %s370
      %s374 = sphi 0, %s373
      %s390 = sphi 0, %s374
      %s396 = sphi 0, %s398
      %s399 = sphi 0, %s396
      %s400 = sphi 0, %s399
      %s416 = sphi 0, %s400
      %s422 = sphi 0, %s424
      %s425 = sphi 0, %s422
      %s426 = sphi 0, %s425
      %s442 = sphi 0, %s426
      %s448 = sphi 0, %s450
      %s451 = sphi 0, %s448
      %s452 = sphi 0, %s451
      %s468 = sphi 0, %s452
      %s474 = sphi 0, %s476
      %s477 = sphi 0, %s474
      %s478 = sphi 0, %s477
      %s494 = sphi 0, %s478
      %s502 = sphi 0, %s504
      %s505 = sphi 0, %s502
      %s506 = sphi 0, %s505
      %s522 = sphi 0, %s506
    $region4: #{tpu_custom_call.1} parent=1 // loop_header_branch
      %39 = sbr.rel (%p37) target = $region8
    $region5: #{tpu_custom_call.1} parent=1 // loop_body
      %s41 = ssub.s32 %s36, 1
      %s42 = ssub.s32 %s36, 2
      %s49 = sadd.s32 1, %s44
      %p50 = scmp.ge.s32.totalorder %s49, 2
      %s51 = scalar_select %p50, 0, %s49
      %s52 = sadd.s32 1, %s43
      %s53 = scalar_select %p50, %s52, %s43
      %p54 = scmp.ge.s32.totalorder %s53, 1
      %s55 = scalar_select %p54, 0, %s53
      %s56 = ssub.s32 %s43, %s55
      %p57 = scmp.eq.s32.totalorder %s56, 0
      %s59 = sadd.s32 %s58, 1
      %s60 = scalar_select %p57, %s58, %s59
      %p63 = pneg %p57
      %p64 = scmp.eq.s32.totalorder %s36, 1
      %p65 = por %p63, %p64
      %p66 = scmp.ne.s32.totalorder %s58, %s61
      %p67 = scmp.eq.s32.totalorder %s36, 0
      %p68 = por %p66, %p67
      %p69 = scmp.ne.s32.totalorder %s58, %s61
      %p70 = scmp.eq.s32.totalorder %s41, 1
      %p71 = por %p69, %p70
      %p72 = scmp.ne.s32.totalorder %s61, %s62
      %p73 = scmp.eq.s32.totalorder %s41, 0
      %p74 = por %p72, %p73
      %p75 = scmp.ne.s32.totalorder %s61, %s62
      %p76 = scmp.eq.s32.totalorder %s42, 1
      %p77 = por %p75, %p76
      %p79 = scmp.ne.s32.totalorder %s62, %s78
      %p80 = scmp.eq.s32.totalorder %s42, 0
      %p81 = por %p79, %p80
      %s82 = ssub.s32 %s44, %s51
      %p83 = scmp.eq.s32.totalorder %s82, 0
      %s85 = sadd.s32 %s84, 1
      %s86 = scalar_select %p83, %s84, %s85
      %p89 = pneg %p83
      %p90 = scmp.eq.s32.totalorder %s36, 1
      %p91 = por %p89, %p90
      %p92 = scmp.ne.s32.totalorder %s84, %s87
      %p93 = scmp.eq.s32.totalorder %s36, 0
      %p94 = por %p92, %p93
      %p95 = scmp.ne.s32.totalorder %s84, %s87
      %p96 = scmp.eq.s32.totalorder %s41, 1
      %p97 = por %p95, %p96
      %p98 = scmp.ne.s32.totalorder %s87, %s88
      %p99 = scmp.eq.s32.totalorder %s41, 0
      %p100 = por %p98, %p99
      %p101 = scmp.ne.s32.totalorder %s87, %s88
      %p102 = scmp.eq.s32.totalorder %s42, 1
      %p103 = por %p101, %p102
      %p105 = scmp.ne.s32.totalorder %s88, %s104
      %p106 = scmp.eq.s32.totalorder %s42, 0
      %p107 = por %p105, %p106
      %s108 = ssub.s32 %s44, %s51
      %p109 = scmp.eq.s32.totalorder %s108, 0
      %s111 = sadd.s32 %s110, 1
      %s112 = scalar_select %p109, %s110, %s111
      %p115 = pneg %p109
      %p116 = scmp.eq.s32.totalorder %s36, 1
      %p117 = por %p115, %p116
      %p118 = scmp.ne.s32.totalorder %s110, %s113
      %p119 = scmp.eq.s32.totalorder %s36, 0
      %p120 = por %p118, %p119
      %p121 = scmp.ne.s32.totalorder %s110, %s113
      %p122 = scmp.eq.s32.totalorder %s41, 1
      %p123 = por %p121, %p122
      %p124 = scmp.ne.s32.totalorder %s113, %s114
      %p125 = scmp.eq.s32.totalorder %s41, 0
      %p126 = por %p124, %p125
      %p127 = scmp.ne.s32.totalorder %s113, %s114
      %p128 = scmp.eq.s32.totalorder %s42, 1
      %p129 = por %p127, %p128
      %p131 = scmp.ne.s32.totalorder %s114, %s130
      %p132 = scmp.eq.s32.totalorder %s42, 0
      %p133 = por %p131, %p132
      %s134 = ssub.s32 %s44, %s51
      %p135 = scmp.eq.s32.totalorder %s134, 0
      %s137 = sadd.s32 %s136, 1
      %s138 = scalar_select %p135, %s136, %s137
      %p141 = pneg %p135
      %p142 = scmp.eq.s32.totalorder %s36, 1
      %p143 = por %p141, %p142
      %p144 = scmp.ne.s32.totalorder %s136, %s139
      %p145 = scmp.eq.s32.totalorder %s36, 0
      %p146 = por %p144, %p145
      %p147 = scmp.ne.s32.totalorder %s136, %s139
      %p148 = scmp.eq.s32.totalorder %s41, 1
      %p149 = por %p147, %p148
      %p150 = scmp.ne.s32.totalorder %s139, %s140
      %p151 = scmp.eq.s32.totalorder %s41, 0
      %p152 = por %p150, %p151
      %p153 = scmp.ne.s32.totalorder %s139, %s140
      %p154 = scmp.eq.s32.totalorder %s42, 1
      %p155 = por %p153, %p154
      %p157 = scmp.ne.s32.totalorder %s140, %s156
      %p158 = scmp.eq.s32.totalorder %s42, 0
      %p159 = por %p157, %p158
      %s160 = ssub.s32 %s44, %s51
      %p161 = scmp.eq.s32.totalorder %s160, 0
      %s163 = sadd.s32 %s162, 1
      %s164 = scalar_select %p161, %s162, %s163
      %p167 = pneg %p161
      %p168 = scmp.eq.s32.totalorder %s36, 1
      %p169 = por %p167, %p168
      %p170 = scmp.ne.s32.totalorder %s162, %s165
      %p171 = scmp.eq.s32.totalorder %s36, 0
      %p172 = por %p170, %p171
      %p173 = scmp.ne.s32.totalorder %s162, %s165
      %p174 = scmp.eq.s32.totalorder %s41, 1
      %p175 = por %p173, %p174
      %p176 = scmp.ne.s32.totalorder %s165, %s166
      %p177 = scmp.eq.s32.totalorder %s41, 0
      %p178 = por %p176, %p177
      %p179 = scmp.ne.s32.totalorder %s165, %s166
      %p180 = scmp.eq.s32.totalorder %s42, 1
      %p181 = por %p179, %p180
      %p183 = scmp.ne.s32.totalorder %s166, %s182
      %p184 = scmp.eq.s32.totalorder %s42, 0
      %p185 = por %p183, %p184
      %s186 = ssub.s32 %s44, %s51
      %p187 = scmp.eq.s32.totalorder %s186, 0
      %s189 = sadd.s32 %s188, 1
      %s190 = scalar_select %p187, %s188, %s189
      %p193 = pneg %p187
      %p194 = scmp.eq.s32.totalorder %s36, 1
      %p195 = por %p193, %p194
      %p196 = scmp.ne.s32.totalorder %s188, %s191
      %p197 = scmp.eq.s32.totalorder %s36, 0
      %p198 = por %p196, %p197
      %p199 = scmp.ne.s32.totalorder %s188, %s191
      %p200 = scmp.eq.s32.totalorder %s41, 1
      %p201 = por %p199, %p200
      %p202 = scmp.ne.s32.totalorder %s191, %s192
      %p203 = scmp.eq.s32.totalorder %s41, 0
      %p204 = por %p202, %p203
      %p205 = scmp.ne.s32.totalorder %s191, %s192
      %p206 = scmp.eq.s32.totalorder %s42, 1
      %p207 = por %p205, %p206
      %p209 = scmp.ne.s32.totalorder %s192, %s208
      %p210 = scmp.eq.s32.totalorder %s42, 0
      %p211 = por %p209, %p210
      %s212 = ssub.s32 %s44, %s51
      %p213 = scmp.eq.s32.totalorder %s212, 0
      %s215 = sadd.s32 %s214, 1
      %s216 = scalar_select %p213, %s214, %s215
      %p219 = pneg %p213
      %p220 = scmp.eq.s32.totalorder %s36, 1
      %p221 = por %p219, %p220
      %p222 = scmp.ne.s32.totalorder %s214, %s217
      %p223 = scmp.eq.s32.totalorder %s36, 0
      %p224 = por %p222, %p223
      %p225 = scmp.ne.s32.totalorder %s214, %s217
      %p226 = scmp.eq.s32.totalorder %s41, 1
      %p227 = por %p225, %p226
      %p228 = scmp.ne.s32.totalorder %s217, %s218
      %p229 = scmp.eq.s32.totalorder %s41, 0
      %p230 = por %p228, %p229
      %p231 = scmp.ne.s32.totalorder %s217, %s218
      %p232 = scmp.eq.s32.totalorder %s42, 1
      %p233 = por %p231, %p232
      %p235 = scmp.ne.s32.totalorder %s218, %s234
      %p236 = scmp.eq.s32.totalorder %s42, 0
      %p237 = por %p235, %p236
      %s238 = ssub.s32 %s44, %s51
      %p239 = scmp.eq.s32.totalorder %s238, 0
      %s241 = sadd.s32 %s240, 1
      %s242 = scalar_select %p239, %s240, %s241
      %p245 = pneg %p239
      %p246 = scmp.eq.s32.totalorder %s36, 1
      %p247 = por %p245, %p246
      %p248 = scmp.ne.s32.totalorder %s240, %s243
      %p249 = scmp.eq.s32.totalorder %s36, 0
      %p250 = por %p248, %p249
      %p251 = scmp.ne.s32.totalorder %s240, %s243
      %p252 = scmp.eq.s32.totalorder %s41, 1
      %p253 = por %p251, %p252
      %p254 = scmp.ne.s32.totalorder %s243, %s244
      %p255 = scmp.eq.s32.totalorder %s41, 0
      %p256 = por %p254, %p255
      %p257 = scmp.ne.s32.totalorder %s243, %s244
      %p258 = scmp.eq.s32.totalorder %s42, 1
      %p259 = por %p257, %p258
      %p261 = scmp.ne.s32.totalorder %s244, %s260
      %p262 = scmp.eq.s32.totalorder %s42, 0
      %p263 = por %p261, %p262
      %s264 = ssub.s32 %s44, %s51
      %p265 = scmp.eq.s32.totalorder %s264, 0
      %s267 = sadd.s32 %s266, 1
      %s268 = scalar_select %p265, %s266, %s267
      %p271 = pneg %p265
      %p272 = scmp.eq.s32.totalorder %s36, 1
      %p273 = por %p271, %p272
      %p274 = scmp.ne.s32.totalorder %s266, %s269
      %p275 = scmp.eq.s32.totalorder %s36, 0
      %p276 = por %p274, %p275
      %p277 = scmp.ne.s32.totalorder %s266, %s269
      %p278 = scmp.eq.s32.totalorder %s41, 1
      %p279 = por %p277, %p278
      %p280 = scmp.ne.s32.totalorder %s269, %s270
      %p281 = scmp.eq.s32.totalorder %s41, 0
      %p282 = por %p280, %p281
      %p283 = scmp.ne.s32.totalorder %s269, %s270
      %p284 = scmp.eq.s32.totalorder %s42, 1
      %p285 = por %p283, %p284
      %p287 = scmp.ne.s32.totalorder %s270, %s286
      %p288 = scmp.eq.s32.totalorder %s42, 0
      %p289 = por %p287, %p288
      %s290 = ssub.s32 %s44, %s51
      %p291 = scmp.eq.s32.totalorder %s290, 0
      %s293 = sadd.s32 %s292, 1
      %s294 = scalar_select %p291, %s292, %s293
      %p297 = pneg %p291
      %p298 = scmp.eq.s32.totalorder %s36, 1
      %p299 = por %p297, %p298
      %p300 = scmp.ne.s32.totalorder %s292, %s295
      %p301 = scmp.eq.s32.totalorder %s36, 0
      %p302 = por %p300, %p301
      %p303 = scmp.ne.s32.totalorder %s292, %s295
      %p304 = scmp.eq.s32.totalorder %s41, 1
      %p305 = por %p303, %p304
      %p306 = scmp.ne.s32.totalorder %s295, %s296
      %p307 = scmp.eq.s32.totalorder %s41, 0
      %p308 = por %p306, %p307
      %p309 = scmp.ne.s32.totalorder %s295, %s296
      %p310 = scmp.eq.s32.totalorder %s42, 1
      %p311 = por %p309, %p310
      %p313 = scmp.ne.s32.totalorder %s296, %s312
      %p314 = scmp.eq.s32.totalorder %s42, 0
      %p315 = por %p313, %p314
      %s316 = ssub.s32 %s44, %s51
      %p317 = scmp.eq.s32.totalorder %s316, 0
      %s319 = sadd.s32 %s318, 1
      %s320 = scalar_select %p317, %s318, %s319
      %p323 = pneg %p317
      %p324 = scmp.eq.s32.totalorder %s36, 1
      %p325 = por %p323, %p324
      %p326 = scmp.ne.s32.totalorder %s318, %s321
      %p327 = scmp.eq.s32.totalorder %s36, 0
      %p328 = por %p326, %p327
      %p329 = scmp.ne.s32.totalorder %s318, %s321
      %p330 = scmp.eq.s32.totalorder %s41, 1
      %p331 = por %p329, %p330
      %p332 = scmp.ne.s32.totalorder %s321, %s322
      %p333 = scmp.eq.s32.totalorder %s41, 0
      %p334 = por %p332, %p333
      %p335 = scmp.ne.s32.totalorder %s321, %s322
      %p336 = scmp.eq.s32.totalorder %s42, 1
      %p337 = por %p335, %p336
      %p339 = scmp.ne.s32.totalorder %s322, %s338
      %p340 = scmp.eq.s32.totalorder %s42, 0
      %p341 = por %p339, %p340
      %s342 = ssub.s32 %s44, %s51
      %p343 = scmp.eq.s32.totalorder %s342, 0
      %s345 = sadd.s32 %s344, 1
      %s346 = scalar_select %p343, %s344, %s345
      %p349 = pneg %p343
      %p350 = scmp.eq.s32.totalorder %s36, 1
      %p351 = por %p349, %p350
      %p352 = scmp.ne.s32.totalorder %s344, %s347
      %p353 = scmp.eq.s32.totalorder %s36, 0
      %p354 = por %p352, %p353
      %p355 = scmp.ne.s32.totalorder %s344, %s347
      %p356 = scmp.eq.s32.totalorder %s41, 1
      %p357 = por %p355, %p356
      %p358 = scmp.ne.s32.totalorder %s347, %s348
      %p359 = scmp.eq.s32.totalorder %s41, 0
      %p360 = por %p358, %p359
      %p361 = scmp.ne.s32.totalorder %s347, %s348
      %p362 = scmp.eq.s32.totalorder %s42, 1
      %p363 = por %p361, %p362
      %p365 = scmp.ne.s32.totalorder %s348, %s364
      %p366 = scmp.eq.s32.totalorder %s42, 0
      %p367 = por %p365, %p366
      %s368 = ssub.s32 %s44, %s51
      %p369 = scmp.eq.s32.totalorder %s368, 0
      %s371 = sadd.s32 %s370, 1
      %s372 = scalar_select %p369, %s370, %s371
      %p375 = pneg %p369
      %p376 = scmp.eq.s32.totalorder %s36, 1
      %p377 = por %p375, %p376
      %p378 = scmp.ne.s32.totalorder %s370, %s373
      %p379 = scmp.eq.s32.totalorder %s36, 0
      %p380 = por %p378, %p379
      %p381 = scmp.ne.s32.totalorder %s370, %s373
      %p382 = scmp.eq.s32.totalorder %s41, 1
      %p383 = por %p381, %p382
      %p384 = scmp.ne.s32.totalorder %s373, %s374
      %p385 = scmp.eq.s32.totalorder %s41, 0
      %p386 = por %p384, %p385
      %p387 = scmp.ne.s32.totalorder %s373, %s374
      %p388 = scmp.eq.s32.totalorder %s42, 1
      %p389 = por %p387, %p388
      %p391 = scmp.ne.s32.totalorder %s374, %s390
      %p392 = scmp.eq.s32.totalorder %s42, 0
      %p393 = por %p391, %p392
      %s394 = ssub.s32 %s44, %s51
      %p395 = scmp.eq.s32.totalorder %s394, 0
      %s397 = sadd.s32 %s396, 1
      %s398 = scalar_select %p395, %s396, %s397
      %p401 = pneg %p395
      %p402 = scmp.eq.s32.totalorder %s36, 1
      %p403 = por %p401, %p402
      %p404 = scmp.ne.s32.totalorder %s396, %s399
      %p405 = scmp.eq.s32.totalorder %s36, 0
      %p406 = por %p404, %p405
      %p407 = scmp.ne.s32.totalorder %s396, %s399
      %p408 = scmp.eq.s32.totalorder %s41, 1
      %p409 = por %p407, %p408
      %p410 = scmp.ne.s32.totalorder %s399, %s400
      %p411 = scmp.eq.s32.totalorder %s41, 0
      %p412 = por %p410, %p411
      %p413 = scmp.ne.s32.totalorder %s399, %s400
      %p414 = scmp.eq.s32.totalorder %s42, 1
      %p415 = por %p413, %p414
      %p417 = scmp.ne.s32.totalorder %s400, %s416
      %p418 = scmp.eq.s32.totalorder %s42, 0
      %p419 = por %p417, %p418
      %s420 = ssub.s32 %s44, %s51
      %p421 = scmp.eq.s32.totalorder %s420, 0
      %s423 = sadd.s32 %s422, 1
      %s424 = scalar_select %p421, %s422, %s423
      %p427 = pneg %p421
      %p428 = scmp.eq.s32.totalorder %s36, 1
      %p429 = por %p427, %p428
      %p430 = scmp.ne.s32.totalorder %s422, %s425
      %p431 = scmp.eq.s32.totalorder %s36, 0
      %p432 = por %p430, %p431
      %p433 = scmp.ne.s32.totalorder %s422, %s425
      %p434 = scmp.eq.s32.totalorder %s41, 1
      %p435 = por %p433, %p434
      %p436 = scmp.ne.s32.totalorder %s425, %s426
      %p437 = scmp.eq.s32.totalorder %s41, 0
      %p438 = por %p436, %p437
      %p439 = scmp.ne.s32.totalorder %s425, %s426
      %p440 = scmp.eq.s32.totalorder %s42, 1
      %p441 = por %p439, %p440
      %p443 = scmp.ne.s32.totalorder %s426, %s442
      %p444 = scmp.eq.s32.totalorder %s42, 0
      %p445 = por %p443, %p444
      %s446 = ssub.s32 %s44, %s51
      %p447 = scmp.eq.s32.totalorder %s446, 0
      %s449 = sadd.s32 %s448, 1
      %s450 = scalar_select %p447, %s448, %s449
      %p453 = pneg %p447
      %p454 = scmp.eq.s32.totalorder %s36, 1
      %p455 = por %p453, %p454
      %p456 = scmp.ne.s32.totalorder %s448, %s451
      %p457 = scmp.eq.s32.totalorder %s36, 0
      %p458 = por %p456, %p457
      %p459 = scmp.ne.s32.totalorder %s448, %s451
      %p460 = scmp.eq.s32.totalorder %s41, 1
      %p461 = por %p459, %p460
      %p462 = scmp.ne.s32.totalorder %s451, %s452
      %p463 = scmp.eq.s32.totalorder %s41, 0
      %p464 = por %p462, %p463
      %p465 = scmp.ne.s32.totalorder %s451, %s452
      %p466 = scmp.eq.s32.totalorder %s42, 1
      %p467 = por %p465, %p466
      %p469 = scmp.ne.s32.totalorder %s452, %s468
      %p470 = scmp.eq.s32.totalorder %s42, 0
      %p471 = por %p469, %p470
      %s472 = ssub.s32 %s44, %s51
      %p473 = scmp.eq.s32.totalorder %s472, 0
      %s475 = sadd.s32 %s474, 1
      %s476 = scalar_select %p473, %s474, %s475
      %p479 = pneg %p473
      %p480 = scmp.eq.s32.totalorder %s36, 1
      %p481 = por %p479, %p480
      %p482 = scmp.ne.s32.totalorder %s474, %s477
      %p483 = scmp.eq.s32.totalorder %s36, 0
      %p484 = por %p482, %p483
      %p485 = scmp.ne.s32.totalorder %s474, %s477
      %p486 = scmp.eq.s32.totalorder %s41, 1
      %p487 = por %p485, %p486
      %p488 = scmp.ne.s32.totalorder %s477, %s478
      %p489 = scmp.eq.s32.totalorder %s41, 0
      %p490 = por %p488, %p489
      %p491 = scmp.ne.s32.totalorder %s477, %s478
      %p492 = scmp.eq.s32.totalorder %s42, 1
      %p493 = por %p491, %p492
      %p495 = scmp.ne.s32.totalorder %s478, %s494
      %p496 = scmp.eq.s32.totalorder %s42, 0
      %p497 = por %p495, %p496
      %s498 = ssub.s32 %s44, %s51
      %s499 = ssub.s32 %s43, %s55
      %s500 = sor.u32 %s498, %s499
      %p501 = scmp.eq.s32.totalorder %s500, 0
      %s503 = sadd.s32 %s502, 1
      %s504 = scalar_select %p501, %s502, %s503
      %p507 = pneg %p501
      %p508 = scmp.eq.s32.totalorder %s36, 1
      %p509 = por %p507, %p508
      %p510 = scmp.ne.s32.totalorder %s502, %s505
      %p511 = scmp.eq.s32.totalorder %s36, 0
      %p512 = por %p510, %p511
      %p513 = scmp.ne.s32.totalorder %s502, %s505
      %p514 = scmp.eq.s32.totalorder %s41, 1
      %p515 = por %p513, %p514
      %p516 = scmp.ne.s32.totalorder %s505, %s506
      %p517 = scmp.eq.s32.totalorder %s41, 0
      %p518 = por %p516, %p517
      %p519 = scmp.ne.s32.totalorder %s505, %s506
      %p520 = scmp.eq.s32.totalorder %s42, 1
      %p521 = por %p519, %p520
      %p523 = scmp.ne.s32.totalorder %s506, %s522
      %p524 = scmp.eq.s32.totalorder %s42, 0
      %p525 = por %p523, %p524
      %p526 = scmp.le.s32.totalorder 1, %s36
      %p527 = scmp.lt.s32.totalorder %s36, 3
      %p528 = pnand %p526, %p527
      %p529 = pneg %p528
      // Predicated region
      $region9: #{tpu_custom_call.1} parent=5 // pred_check
        _
      $region10: #{tpu_custom_call.1} parent=5 // pred_check_branch
        %531 = sbr.rel (%p528) target = $region12
      $region11: #{tpu_custom_call.1} parent=5 // pred_region
        %s532 = ssub.s32 %s36, 1
        // Predicated region
        $region13: #{tpu_custom_call.1} parent=11 // pred_check
          %p533 = pneg %p74
        $region14: #{tpu_custom_call.1} parent=11 // pred_check_branch
          %535 = sbr.rel (%p533) target = $region16
        $region15: #{tpu_custom_call.1} parent=11 // pred_region
          %s536 = smul.u32 2, %s45
          %538 = vsyncadd [#allocation5], 0
          %s539 = smul.addr %s536, 8
          %s540 = scalar_lea.hbm %s0, %s539
          %s541 = sshll.u32 %s540, 4
          %s542 = int_to_ptr.hbm [resolvable:$true] %s541
          %s543 = sshll.u32 [#allocation4], 4
          %s544 = int_to_ptr.vmem [resolvable:$true] %s543
          %549 = dma.hbm_to_vmem [thread:$0]  %s542, 256, %s544, [#allocation5], 128, 128, 8
        $region16: #{tpu_custom_call.1} parent=11 // pred_fallthru
          _
      $region12: #{tpu_custom_call.1} parent=5 // pred_fallthru
        _
      %p550 = scmp.lt.s32.totalorder %s36, 2
      // Predicated region
      $region17: #{tpu_custom_call.1} parent=5 // pred_check
        %p551 = pneg %p550
      $region18: #{tpu_custom_call.1} parent=5 // pred_check_branch
        %553 = sbr.rel (%p551) target = $region20
      $region19: #{tpu_custom_call.1} parent=5 // pred_region
        // Predicated region
        $region21: #{tpu_custom_call.1} parent=19 // pred_check
          %p554 = pneg %p94
        $region22: #{tpu_custom_call.1} parent=19 // pred_check_branch
          %556 = sbr.rel (%p554) target = $region24
        $region23: #{tpu_custom_call.1} parent=19 // pred_region
          %p557 = scmp.lt.s32.totalorder %s44, 1
          %s558 = scalar_select %p557, %s44, 1
          %s559 = smul.addr %s558, 4
          %s560 = smul.addr %s559, 8
          %s561 = scalar_lea.vmem %s1, %s560
        $region24: #{tpu_custom_call.1} parent=19 // pred_fallthru
          _
        // Predicated region
        $region25: #{tpu_custom_call.1} parent=19 // pred_check
          %p562 = pneg %p120
        $region26: #{tpu_custom_call.1} parent=19 // pred_check_branch
          %564 = sbr.rel (%p562) target = $region28
        $region27: #{tpu_custom_call.1} parent=19 // pred_region
          %p565 = scmp.lt.s32.totalorder %s44, 1
          %s566 = scalar_select %p565, %s44, 1
          %s567 = smul.addr %s566, 4
          %s568 = smul.addr %s567, 8
          %s569 = scalar_lea.vmem %s2, %s568
        $region28: #{tpu_custom_call.1} parent=19 // pred_fallthru
          _
        // Predicated region
        $region29: #{tpu_custom_call.1} parent=19 // pred_check
          %p570 = pneg %p146
        $region30: #{tpu_custom_call.1} parent=19 // pred_check_branch
          %572 = sbr.rel (%p570) target = $region32
        $region31: #{tpu_custom_call.1} parent=19 // pred_region
          %p573 = scmp.lt.s32.totalorder %s44, 1
          %s574 = scalar_select %p573, %s44, 1
          %s575 = smul.addr %s574, 4
          %s576 = smul.addr %s575, 8
          %s577 = scalar_lea.vmem %s3, %s576
        $region32: #{tpu_custom_call.1} parent=19 // pred_fallthru
          _
        // Predicated region
        $region33: #{tpu_custom_call.1} parent=19 // pred_check
          %p578 = pneg %p172
        $region34: #{tpu_custom_call.1} parent=19 // pred_check_branch
          %580 = sbr.rel (%p578) target = $region36
        $region35: #{tpu_custom_call.1} parent=19 // pred_region
          %p581 = scmp.lt.s32.totalorder %s44, 1
          %s582 = scalar_select %p581, %s44, 1
          %s583 = scalar_lea.vmem %s4, %s582
        $region36: #{tpu_custom_call.1} parent=19 // pred_fallthru
          _
        // Predicated region
        $region37: #{tpu_custom_call.1} parent=19 // pred_check
          %p584 = pneg %p198
        $region38: #{tpu_custom_call.1} parent=19 // pred_check_branch
          %586 = sbr.rel (%p584) target = $region40
        $region39: #{tpu_custom_call.1} parent=19 // pred_region
          %s587 = sand.u32 %s36, 1
          %s588 = scalar_lea.sflag [#allocation8], %s587
          %s589 = sand.u32 %s188, 1
          %s590 = scalar_lea.vmem [#allocation7], %s589
          %592 = vsyncadd %s588, 0
          %s593 = scalar_lea.hbm %s5, %s44
          %s595 = sshll.u32 %s593, 4
          %s596 = int_to_ptr.hbm [resolvable:$true] %s595
          %s597 = sshll.u32 %s590, 4
          %s598 = int_to_ptr.vmem [resolvable:$true] %s597
          %600 = dma.hbm_to_vmem [thread:$0]  %s596, 16, %s598, %s588
        $region40: #{tpu_custom_call.1} parent=19 // pred_fallthru
          _
        // Predicated region
        $region41: #{tpu_custom_call.1} parent=19 // pred_check
          %p601 = pneg %p224
        $region42: #{tpu_custom_call.1} parent=19 // pred_check_branch
          %603 = sbr.rel (%p601) target = $region44
        $region43: #{tpu_custom_call.1} parent=19 // pred_region
          %p604 = scmp.lt.s32.totalorder %s44, 1
          %s605 = scalar_select %p604, %s44, 1
          %s606 = scalar_lea.vmem %s6, %s605
        $region44: #{tpu_custom_call.1} parent=19 // pred_fallthru
          _
        // Predicated region
        $region45: #{tpu_custom_call.1} parent=19 // pred_check
          %p607 = pneg %p250
        $region46: #{tpu_custom_call.1} parent=19 // pred_check_branch
          %609 = sbr.rel (%p607) target = $region48
        $region47: #{tpu_custom_call.1} parent=19 // pred_region
          %s610 = sand.u32 %s36, 1
          %s611 = scalar_lea.sflag [#allocation8], %s610
          %s612 = sand.u32 %s240, 1
          %s613 = smul.addr %s612, 32
          %s614 = scalar_lea.vmem [#allocation9], %s613
          %616 = vsyncadd %s611, 0
          %s617 = smul.addr %s44, 4
          %s618 = smul.addr %s617, 8
          %s619 = scalar_lea.hbm %s7, %s618
          %s620 = sshll.u32 %s619, 4
          %s621 = int_to_ptr.hbm [resolvable:$true] %s620
          %s622 = sshll.u32 %s614, 4
          %s623 = int_to_ptr.vmem [resolvable:$true] %s622
          %628 = dma.hbm_to_vmem [thread:$0]  %s621, 512, %s623, %s611, 128, 128, 8
        $region48: #{tpu_custom_call.1} parent=19 // pred_fallthru
          _
        // Predicated region
        $region49: #{tpu_custom_call.1} parent=19 // pred_check
          %p629 = pneg %p276
        $region50: #{tpu_custom_call.1} parent=19 // pred_check_branch
          %631 = sbr.rel (%p629) target = $region52
        $region51: #{tpu_custom_call.1} parent=19 // pred_region
          %s632 = sand.u32 %s36, 1
          %s633 = scalar_lea.sflag [#allocation11], %s632
          %s634 = sand.u32 %s266, 1
          %s635 = scalar_lea.vmem [#allocation10], %s634
          %637 = vsyncadd %s633, 0
          %s638 = scalar_lea.hbm %s8, %s44
          %s640 = sshll.u32 %s638, 4
          %s641 = int_to_ptr.hbm [resolvable:$true] %s640
          %s642 = sshll.u32 %s635, 4
          %s643 = int_to_ptr.vmem [resolvable:$true] %s642
          %645 = dma.hbm_to_vmem [thread:$0]  %s641, 16, %s643, %s633
        $region52: #{tpu_custom_call.1} parent=19 // pred_fallthru
          _
        // Predicated region
        $region53: #{tpu_custom_call.1} parent=19 // pred_check
          %p646 = pneg %p302
        $region54: #{tpu_custom_call.1} parent=19 // pred_check_branch
          %648 = sbr.rel (%p646) target = $region56
        $region55: #{tpu_custom_call.1} parent=19 // pred_region
          %p649 = scmp.lt.s32.totalorder %s44, 1
          %s650 = scalar_select %p649, %s44, 1
          %s651 = scalar_lea.vmem %s9, %s650
        $region56: #{tpu_custom_call.1} parent=19 // pred_fallthru
          _
        // Predicated region
        $region57: #{tpu_custom_call.1} parent=19 // pred_check
          %p652 = pneg %p328
        $region58: #{tpu_custom_call.1} parent=19 // pred_check_branch
          %654 = sbr.rel (%p652) target = $region60
        $region59: #{tpu_custom_call.1} parent=19 // pred_region
          %p655 = scmp.lt.s32.totalorder %s44, 1
          %s656 = scalar_select %p655, %s44, 1
          %s657 = scalar_lea.vmem %s10, %s656
        $region60: #{tpu_custom_call.1} parent=19 // pred_fallthru
          _
        // Predicated region
        $region61: #{tpu_custom_call.1} parent=19 // pred_check
          %p658 = pneg %p354
        $region62: #{tpu_custom_call.1} parent=19 // pred_check_branch
          %660 = sbr.rel (%p658) target = $region64
        $region63: #{tpu_custom_call.1} parent=19 // pred_region
          %s661 = sand.u32 %s36, 1
          %s662 = scalar_lea.sflag [#allocation11], %s661
          %s663 = sand.u32 %s344, 1
          %s664 = scalar_lea.vmem [#allocation12], %s663
          %666 = vsyncadd %s662, 0
          %s667 = scalar_lea.hbm %s11, %s44
          %s669 = sshll.u32 %s667, 4
          %s670 = int_to_ptr.hbm [resolvable:$true] %s669
          %s671 = sshll.u32 %s664, 4
          %s672 = int_to_ptr.vmem [resolvable:$true] %s671
          %674 = dma.hbm_to_vmem [thread:$0]  %s670, 16, %s672, %s662
        $region64: #{tpu_custom_call.1} parent=19 // pred_fallthru
          _
        // Predicated region
        $region65: #{tpu_custom_call.1} parent=19 // pred_check
          %p675 = pneg %p380
        $region66: #{tpu_custom_call.1} parent=19 // pred_check_branch
          %677 = sbr.rel (%p675) target = $region68
        $region67: #{tpu_custom_call.1} parent=19 // pred_region
          %p678 = scmp.lt.s32.totalorder %s44, 1
          %s679 = scalar_select %p678, %s44, 1
          %s680 = scalar_lea.vmem %s12, %s679
        $region68: #{tpu_custom_call.1} parent=19 // pred_fallthru
          _
        // Predicated region
        $region69: #{tpu_custom_call.1} parent=19 // pred_check
          %p681 = pneg %p406
        $region70: #{tpu_custom_call.1} parent=19 // pred_check_branch
          %683 = sbr.rel (%p681) target = $region72
        $region71: #{tpu_custom_call.1} parent=19 // pred_region
          %s684 = sand.u32 %s36, 1
          %s685 = scalar_lea.sflag [#allocation14], %s684
          %s686 = sand.u32 %s396, 1
          %s687 = smul.addr %s686, 32
          %s688 = scalar_lea.vmem [#allocation13], %s687
          %690 = vsyncadd %s685, 0
          %s691 = smul.addr %s44, 4
          %s692 = smul.addr %s691, 8
          %s693 = scalar_lea.hbm %s13, %s692
          %s694 = sshll.u32 %s693, 4
          %s695 = int_to_ptr.hbm [resolvable:$true] %s694
          %s696 = sshll.u32 %s688, 4
          %s697 = int_to_ptr.vmem [resolvable:$true] %s696
          %702 = dma.hbm_to_vmem [thread:$0]  %s695, 512, %s697, %s685, 128, 128, 8
        $region72: #{tpu_custom_call.1} parent=19 // pred_fallthru
          _
        // Predicated region
        $region73: #{tpu_custom_call.1} parent=19 // pred_check
          %p703 = pneg %p432
        $region74: #{tpu_custom_call.1} parent=19 // pred_check_branch
          %705 = sbr.rel (%p703) target = $region76
        $region75: #{tpu_custom_call.1} parent=19 // pred_region
          %s706 = sand.u32 %s36, 1
          %s707 = scalar_lea.sflag [#allocation14], %s706
          %s708 = sand.u32 %s422, 1
          %s709 = scalar_lea.vmem [#allocation15], %s708
          %711 = vsyncadd %s707, 0
          %s712 = scalar_lea.hbm %s14, %s44
          %s714 = sshll.u32 %s712, 4
          %s715 = int_to_ptr.hbm [resolvable:$true] %s714
          %s716 = sshll.u32 %s709, 4
          %s717 = int_to_ptr.vmem [resolvable:$true] %s716
          %719 = dma.hbm_to_vmem [thread:$0]  %s715, 16, %s717, %s707
        $region76: #{tpu_custom_call.1} parent=19 // pred_fallthru
          _
        // Predicated region
        $region77: #{tpu_custom_call.1} parent=19 // pred_check
          %p720 = pneg %p458
        $region78: #{tpu_custom_call.1} parent=19 // pred_check_branch
          %722 = sbr.rel (%p720) target = $region80
        $region79: #{tpu_custom_call.1} parent=19 // pred_region
          %p723 = scmp.lt.s32.totalorder %s44, 1
          %s724 = scalar_select %p723, %s44, 1
          %s725 = smul.addr %s724, 8
          %s726 = smul.addr %s725, 8
          %s727 = scalar_lea.vmem %s15, %s726
        $region80: #{tpu_custom_call.1} parent=19 // pred_fallthru
          _
        // Predicated region
        $region81: #{tpu_custom_call.1} parent=19 // pred_check
          %p728 = pneg %p484
        $region82: #{tpu_custom_call.1} parent=19 // pred_check_branch
          %730 = sbr.rel (%p728) target = $region84
        $region83: #{tpu_custom_call.1} parent=19 // pred_region
          %p731 = scmp.lt.s32.totalorder %s44, 1
          %s732 = scalar_select %p731, %s44, 1
          %s733 = scalar_lea.vmem %s16, %s732
        $region84: #{tpu_custom_call.1} parent=19 // pred_fallthru
          _
      $region20: #{tpu_custom_call.1} parent=5 // pred_fallthru
        _
      %p734 = scmp.le.s32.totalorder 1, %s36
      %p735 = scmp.lt.s32.totalorder %s36, 3
      %p736 = pnand %p734, %p735
      %p737 = pneg %p736
      // Predicated region
      $region85: #{tpu_custom_call.1} parent=5 // pred_check
        _
      $region86: #{tpu_custom_call.1} parent=5 // pred_check_branch
        %739 = sbr.rel (%p736) target = $region88
      $region87: #{tpu_custom_call.1} parent=5 // pred_region
        %s740 = ssub.s32 %s36, 1
        // Predicated region
        $region89: #{tpu_custom_call.1} parent=87 // pred_check
          %p741 = pneg %p74
        $region90: #{tpu_custom_call.1} parent=87 // pred_check_branch
          %743 = sbr.rel (%p741) target = $region92
        $region91: #{tpu_custom_call.1} parent=87 // pred_region
          %745 = dma.done [#allocation5], 256
        $region92: #{tpu_custom_call.1} parent=87 // pred_fallthru
          _
        %s746 = sand.u32 %s41, 1
        %s747 = scalar_lea.sflag [#allocation8], %s746
        %s748 = sand.u32 %s191, 1
        %s749 = scalar_lea.vmem [#allocation7], %s748
        // Predicated region
        $region93: #{tpu_custom_call.1} parent=87 // pred_check
          %p750 = pneg %p204
        $region94: #{tpu_custom_call.1} parent=87 // pred_check_branch
          %752 = sbr.rel (%p750) target = $region96
        $region95: #{tpu_custom_call.1} parent=87 // pred_region
          %754 = dma.done %s747, 16
        $region96: #{tpu_custom_call.1} parent=87 // pred_fallthru
          _
        %s755 = sand.u32 %s41, 1
        %s756 = scalar_lea.sflag [#allocation8], %s755
        %s757 = sand.u32 %s243, 1
        %s758 = smul.addr %s757, 32
        %s759 = scalar_lea.vmem [#allocation9], %s758
        // Predicated region
        $region97: #{tpu_custom_call.1} parent=87 // pred_check
          %p760 = pneg %p256
        $region98: #{tpu_custom_call.1} parent=87 // pred_check_branch
          %762 = sbr.rel (%p760) target = $region100
        $region99: #{tpu_custom_call.1} parent=87 // pred_region
          %764 = dma.done %s756, 512
        $region100: #{tpu_custom_call.1} parent=87 // pred_fallthru
          _
        %s765 = sand.u32 %s41, 1
        %s766 = scalar_lea.sflag [#allocation11], %s765
        %s767 = sand.u32 %s269, 1
        %s768 = scalar_lea.vmem [#allocation10], %s767
        // Predicated region
        $region101: #{tpu_custom_call.1} parent=87 // pred_check
          %p769 = pneg %p282
        $region102: #{tpu_custom_call.1} parent=87 // pred_check_branch
          %771 = sbr.rel (%p769) target = $region104
        $region103: #{tpu_custom_call.1} parent=87 // pred_region
          %773 = dma.done %s766, 16
        $region104: #{tpu_custom_call.1} parent=87 // pred_fallthru
          _
        %s774 = sand.u32 %s41, 1
        %s775 = scalar_lea.sflag [#allocation11], %s774
        %s776 = sand.u32 %s347, 1
        %s777 = scalar_lea.vmem [#allocation12], %s776
        // Predicated region
        $region105: #{tpu_custom_call.1} parent=87 // pred_check
          %p778 = pneg %p360
        $region106: #{tpu_custom_call.1} parent=87 // pred_check_branch
          %780 = sbr.rel (%p778) target = $region108
        $region107: #{tpu_custom_call.1} parent=87 // pred_region
          %782 = dma.done %s775, 16
        $region108: #{tpu_custom_call.1} parent=87 // pred_fallthru
          _
        %s783 = sand.u32 %s41, 1
        %s784 = scalar_lea.sflag [#allocation14], %s783
        %s785 = sand.u32 %s399, 1
        %s786 = smul.addr %s785, 32
        %s787 = scalar_lea.vmem [#allocation13], %s786
        // Predicated region
        $region109: #{tpu_custom_call.1} parent=87 // pred_check
          %p788 = pneg %p412
        $region110: #{tpu_custom_call.1} parent=87 // pred_check_branch
          %790 = sbr.rel (%p788) target = $region112
        $region111: #{tpu_custom_call.1} parent=87 // pred_region
          %792 = dma.done %s784, 512
        $region112: #{tpu_custom_call.1} parent=87 // pred_fallthru
          _
        %s793 = sand.u32 %s41, 1
        %s794 = scalar_lea.sflag [#allocation14], %s793
        %s795 = sand.u32 %s425, 1
        %s796 = scalar_lea.vmem [#allocation15], %s795
        // Predicated region
        $region113: #{tpu_custom_call.1} parent=87 // pred_check
          %p797 = pneg %p438
        $region114: #{tpu_custom_call.1} parent=87 // pred_check_branch
          %799 = sbr.rel (%p797) target = $region116
        $region115: #{tpu_custom_call.1} parent=87 // pred_region
          %801 = dma.done %s794, 16
        $region116: #{tpu_custom_call.1} parent=87 // pred_fallthru
          _
        %p802 = pneg %p74
        %p803 = pneg %p71
        %p804 = scmp.lt.s32.totalorder %s46, 1
        %s805 = scalar_select %p804, %s46, 1
        %s806 = smul.addr %s805, 4
        %s807 = smul.addr %s806, 8
        %s808 = scalar_lea.vmem %s1, %s807
        %p809 = pneg %p100
        %p810 = pneg %p97
        %p811 = scmp.lt.s32.totalorder %s46, 1
        %s812 = scalar_select %p811, %s46, 1
        %s813 = smul.addr %s812, 4
        %s814 = smul.addr %s813, 8
        %s815 = scalar_lea.vmem %s2, %s814
        %p816 = pneg %p126
        %p817 = pneg %p123
        %p818 = scmp.lt.s32.totalorder %s46, 1
        %s819 = scalar_select %p818, %s46, 1
        %s820 = smul.addr %s819, 4
        %s821 = smul.addr %s820, 8
        %s822 = scalar_lea.vmem %s3, %s821
        %p823 = pneg %p152
        %p824 = pneg %p149
        %p825 = scmp.lt.s32.totalorder %s46, 1
        %s826 = scalar_select %p825, %s46, 1
        %s827 = scalar_lea.vmem %s4, %s826
        %p828 = pneg %p178
        %p829 = pneg %p175
        %s830 = sand.u32 %s41, 1
        %s831 = scalar_lea.sflag [#allocation8], %s830
        %s832 = sand.u32 %s191, 1
        %s833 = scalar_lea.vmem [#allocation7], %s832
        %p834 = pneg %p204
        %p835 = pneg %p201
        %p836 = scmp.lt.s32.totalorder %s46, 1
        %s837 = scalar_select %p836, %s46, 1
        %s838 = scalar_lea.vmem %s6, %s837
        %p839 = pneg %p230
        %p840 = pneg %p227
        %s841 = sand.u32 %s41, 1
        %s842 = scalar_lea.sflag [#allocation8], %s841
        %s843 = sand.u32 %s243, 1
        %s844 = smul.addr %s843, 32
        %s845 = scalar_lea.vmem [#allocation9], %s844
        %p846 = pneg %p256
        %p847 = pneg %p253
        %s848 = sand.u32 %s41, 1
        %s849 = scalar_lea.sflag [#allocation11], %s848
        %s850 = sand.u32 %s269, 1
        %s851 = scalar_lea.vmem [#allocation10], %s850
        %p852 = pneg %p282
        %p853 = pneg %p279
        %p854 = scmp.lt.s32.totalorder %s46, 1
        %s855 = scalar_select %p854, %s46, 1
        %s856 = scalar_lea.vmem %s9, %s855
        %p857 = pneg %p308
        %p858 = pneg %p305
        %p859 = scmp.lt.s32.totalorder %s46, 1
        %s860 = scalar_select %p859, %s46, 1
        %s861 = scalar_lea.vmem %s10, %s860
        %p862 = pneg %p334
        %p863 = pneg %p331
        %s864 = sand.u32 %s41, 1
        %s865 = scalar_lea.sflag [#allocation11], %s864
        %s866 = sand.u32 %s347, 1
        %s867 = scalar_lea.vmem [#allocation12], %s866
        %p868 = pneg %p360
        %p869 = pneg %p357
        %p870 = scmp.lt.s32.totalorder %s46, 1
        %s871 = scalar_select %p870, %s46, 1
        %s872 = scalar_lea.vmem %s12, %s871
        %p873 = pneg %p386
        %p874 = pneg %p383
        %s875 = sand.u32 %s41, 1
        %s876 = scalar_lea.sflag [#allocation14], %s875
        %s877 = sand.u32 %s399, 1
        %s878 = smul.addr %s877, 32
        %s879 = scalar_lea.vmem [#allocation13], %s878
        %p880 = pneg %p412
        %p881 = pneg %p409
        %s882 = sand.u32 %s41, 1
        %s883 = scalar_lea.sflag [#allocation14], %s882
        %s884 = sand.u32 %s425, 1
        %s885 = scalar_lea.vmem [#allocation15], %s884
        %p886 = pneg %p438
        %p887 = pneg %p435
        %p888 = scmp.lt.s32.totalorder %s46, 1
        %s889 = scalar_select %p888, %s46, 1
        %s890 = smul.addr %s889, 8
        %s891 = smul.addr %s890, 8
        %s892 = scalar_lea.vmem %s15, %s891
        %p893 = pneg %p464
        %p894 = pneg %p461
        %p895 = scmp.lt.s32.totalorder %s46, 1
        %s896 = scalar_select %p895, %s46, 1
        %s897 = scalar_lea.vmem %s16, %s896
        %p898 = pneg %p490
        %p899 = pneg %p487
        %p900 = pneg %p518
        %p901 = pneg %p515
        %s902 = sand.u32 %s505, 1
        %s903 = scalar_lea.sflag [#allocation6], %s902
        %s904 = sand.u32 %s505, 1
        %s905 = smul.addr %s904, 16
        %s906 = scalar_lea.vmem [#allocation16], %s905
        %s907 = smul.u32 2, %s45
        %p908 = scmp.lt.s32.totalorder %s46, 1
        %s909 = scalar_select %p908, %s46, 1
        %s910 = smul.addr %s909, 4
        %s911 = smul.addr %s910, 8
        %s912 = scalar_lea.vmem %s1, %s911
        %p913 = scmp.lt.s32.totalorder %s46, 1
        %s914 = scalar_select %p913, %s46, 1
        %s915 = smul.addr %s914, 4
        %s916 = smul.addr %s915, 8
        %s917 = scalar_lea.vmem %s2, %s916
        %p918 = scmp.lt.s32.totalorder %s46, 1
        %s919 = scalar_select %p918, %s46, 1
        %s920 = smul.addr %s919, 4
        %s921 = smul.addr %s920, 8
        %s922 = scalar_lea.vmem %s3, %s921
        %p923 = scmp.lt.s32.totalorder %s46, 1
        %s924 = scalar_select %p923, %s46, 1
        %s925 = scalar_lea.vmem %s4, %s924
        %p926 = scmp.lt.s32.totalorder %s46, 1
        %s927 = scalar_select %p926, %s46, 1
        %s928 = scalar_lea.vmem %s6, %s927
        %p929 = scmp.lt.s32.totalorder %s46, 1
        %s930 = scalar_select %p929, %s46, 1
        %s931 = scalar_lea.vmem %s9, %s930
        %p932 = scmp.lt.s32.totalorder %s46, 1
        %s933 = scalar_select %p932, %s46, 1
        %s934 = scalar_lea.vmem %s10, %s933
        %p935 = scmp.lt.s32.totalorder %s46, 1
        %s936 = scalar_select %p935, %s46, 1
        %s937 = scalar_lea.vmem %s12, %s936
        %p938 = scmp.lt.s32.totalorder %s46, 1
        %s939 = scalar_select %p938, %s46, 1
        %s940 = smul.addr %s939, 8
        %s941 = smul.addr %s940, 8
        %s942 = scalar_lea.vmem %s15, %s941
        %p943 = scmp.lt.s32.totalorder %s46, 1
        %s944 = scalar_select %p943, %s46, 1
        %s945 = scalar_lea.vmem %s16, %s944
        %s946 = smul.u32 2, %s45
        %p947 = scmp.eq.s32.totalorder %s46, 0
        // Predicated region
        $region117: #{tpu_custom_call.1} parent=87 // pred_check
          %p948 = pneg %p947
        $region118: #{tpu_custom_call.1} parent=87 // pred_check_branch
          %950 = sbr.rel (%p948) target = $region120
        $region119: #{tpu_custom_call.1} parent=87 // pred_region
          %v951 = vld [vmem:[#allocation4] sm:$0xff]
          %v952 = vld [vmem:[#allocation4 + $0x8] sm:$0xff]
          %vm953 = vcmask 261120
          %954 = vst.msk [vmem:[#allocation2] sm:$0xff] %vm953, %v951
          %955 = vst.msk [vmem:[#allocation2 + $0x8] sm:$0xff] %vm953, %v952
        $region120: #{tpu_custom_call.1} parent=87 // pred_fallthru
          _
        %v956 = vld [vmem:[#allocation2] sm:$0xff]
        %v957 = vld [vmem:[#allocation2 + $0x8] sm:$0xff]
        %v958 = vld [vmem:[%s912] sm:$0xff]
        %v959 = vld [vmem:[%s912 + $0x8] sm:$0xff]
        %v960 = vld [vmem:[%s912 + $0x10] sm:$0xff]
        %v961 = vld [vmem:[%s912 + $0x18] sm:$0xff]
        %v962 = vld [vmem:[%s925] sm:$0x1]
        %v964 = vperm.slane %v962, 0
        %vm966 = vcmask 261120
        %v968 = vsel %vm966, %v956, 0
        %v971 = vsel %vm966, %v957, 0
        %973 = vmatpush.msra.mxu0 0.0
        %974 = vmatpush.msra.mxu0 0.0
        %975 = vmatpush.msra.mxu0 0.0
        %976 = vmatpush.msra.mxu0 0.0
        %977 = vmatpush.msra.mxu0 0.0
        %978 = vmatpush.msra.mxu0 0.0
        %979 = vmatpush.msra.mxu0 0.0
        %980 = vmatpush.msra.mxu0 0.0
        %981 = vmatpush.msra.mxu0 0.0
        %982 = vmatpush.msra.mxu0 0.0
        %983 = vmatpush.msra.mxu0 0.0
        %984 = vmatpush.msra.mxu0 0.0
        %985 = vmatpush.msra.mxu0 %v961
        %986 = vmatpush.msra.mxu0 %v960
        %987 = vmatpush.msra.mxu0 %v959
        %988 = vmatpush.msra.mxu0 %v958
        %989 = vmatmul.f32.gmra.mxu0 %v968
        %v990 = vpop.f32.mrf.mxu0
        %v991 = vadd.f32 %v964, %v990
        %992 = vmatmul.f32.gmra.mxu0 %v971
        %v993 = vpop.f32.mrf.mxu0
        %v994 = vadd.f32 %v964, %v993
        %995 = vdwg.mxu0
        %v996 = vld [vmem:[%s917] sm:$0xff]
        %v997 = vld [vmem:[%s917 + $0x8] sm:$0xff]
        %v998 = vld [vmem:[%s917 + $0x10] sm:$0xff]
        %v999 = vld [vmem:[%s917 + $0x18] sm:$0xff]
        %v1000 = vld [vmem:[%s749] sm:$0x1]
        %v1002 = vperm.slane %v1000, 0
        %1004 = vmatpush.msra.mxu0 0.0
        %1005 = vmatpush.msra.mxu0 0.0
        %1006 = vmatpush.msra.mxu0 0.0
        %1007 = vmatpush.msra.mxu0 0.0
        %1008 = vmatpush.msra.mxu0 0.0
        %1009 = vmatpush.msra.mxu0 0.0
        %1010 = vmatpush.msra.mxu0 0.0
        %1011 = vmatpush.msra.mxu0 0.0
        %1012 = vmatpush.msra.mxu0 0.0
        %1013 = vmatpush.msra.mxu0 0.0
        %1014 = vmatpush.msra.mxu0 0.0
        %1015 = vmatpush.msra.mxu0 0.0
        %1016 = vmatpush.msra.mxu0 %v999
        %1017 = vmatpush.msra.mxu0 %v998
        %1018 = vmatpush.msra.mxu0 %v997
        %1019 = vmatpush.msra.mxu0 %v996
        %1020 = vmatmul.f32.gmra.mxu0 %v968
        %v1021 = vpop.f32.mrf.mxu0
        %v1022 = vadd.f32 %v1002, %v1021
        %1023 = vmatmul.f32.gmra.mxu0 %v971
        %v1024 = vpop.f32.mrf.mxu0
        %v1025 = vadd.f32 %v1002, %v1024
        %1026 = vdwg.mxu0
        %v1027 = vld [vmem:[%s922] sm:$0xff]
        %v1028 = vld [vmem:[%s922 + $0x8] sm:$0xff]
        %v1029 = vld [vmem:[%s922 + $0x10] sm:$0xff]
        %v1030 = vld [vmem:[%s922 + $0x18] sm:$0xff]
        %v1031 = vld [vmem:[%s928] sm:$0x1]
        %v1033 = vperm.slane %v1031, 0
        %1035 = vmatpush.msra.mxu0 0.0
        %1036 = vmatpush.msra.mxu0 0.0
        %1037 = vmatpush.msra.mxu0 0.0
        %1038 = vmatpush.msra.mxu0 0.0
        %1039 = vmatpush.msra.mxu0 0.0
        %1040 = vmatpush.msra.mxu0 0.0
        %1041 = vmatpush.msra.mxu0 0.0
        %1042 = vmatpush.msra.mxu0 0.0
        %1043 = vmatpush.msra.mxu0 0.0
        %1044 = vmatpush.msra.mxu0 0.0
        %1045 = vmatpush.msra.mxu0 0.0
        %1046 = vmatpush.msra.mxu0 0.0
        %1047 = vmatpush.msra.mxu0 %v1030
        %1048 = vmatpush.msra.mxu0 %v1029
        %1049 = vmatpush.msra.mxu0 %v1028
        %1050 = vmatpush.msra.mxu0 %v1027
        %1051 = vmatmul.f32.gmra.mxu0 %v968
        %v1052 = vpop.f32.mrf.mxu0
        %v1053 = vadd.f32 %v1033, %v1052
        %1054 = vmatmul.f32.gmra.mxu0 %v971
        %v1055 = vpop.f32.mrf.mxu0
        %v1056 = vadd.f32 %v1033, %v1055
        %1057 = vdwg.mxu0
        %vm1058 = vcmask 64512
        %v1060 = vsel %vm1058, %v991, 0
        %v1063 = vsel %vm1058, %v1022, 0
        %1065 = vmatpush.xpose.msra.mxu0 0.0
        %1066 = vmatpush.xpose.msra.mxu0 0.0
        %1067 = vmatpush.xpose.msra.mxu0 0.0
        %1068 = vmatpush.xpose.msra.mxu0 0.0
        %1069 = vmatpush.xpose.msra.mxu0 0.0
        %1070 = vmatpush.xpose.msra.mxu0 0.0
        %1071 = vmatpush.xpose.msra.mxu0 0.0
        %1072 = vmatpush.xpose.msra.mxu0 0.0
        %1073 = vmatpush.xpose.msra.mxu0 0.0
        %1074 = vmatpush.xpose.msra.mxu0 0.0
        %1075 = vmatpush.xpose.msra.mxu0 0.0
        %1076 = vmatpush.xpose.msra.mxu0 0.0
        %1077 = vmatpush.xpose.msra.mxu0 0.0
        %1078 = vmatpush.xpose.msra.mxu0 0.0
        %1079 = vmatpush.xpose.msra.mxu0 0.0
        %1080 = vmatpush.xpose.msra.mxu0 %v1063
        %1081 = vmatmul.f32.gmra.mxu0 %v1060
        %v1082 = vpop.f32.mrf.mxu0
        %v1083 = vadd.f32 0.0, %v1082
        %1084 = vdwg.mxu0
        %v1086 = vsel %vm1058, %v994, 0
        %v1089 = vsel %vm1058, %v1025, 0
        %1091 = vmatpush.xpose.msra.mxu0 0.0
        %1092 = vmatpush.xpose.msra.mxu0 0.0
        %1093 = vmatpush.xpose.msra.mxu0 0.0
        %1094 = vmatpush.xpose.msra.mxu0 0.0
        %1095 = vmatpush.xpose.msra.mxu0 0.0
        %1096 = vmatpush.xpose.msra.mxu0 0.0
        %1097 = vmatpush.xpose.msra.mxu0 0.0
        %1098 = vmatpush.xpose.msra.mxu0 0.0
        %1099 = vmatpush.xpose.msra.mxu0 0.0
        %1100 = vmatpush.xpose.msra.mxu0 0.0
        %1101 = vmatpush.xpose.msra.mxu0 0.0
        %1102 = vmatpush.xpose.msra.mxu0 0.0
        %1103 = vmatpush.xpose.msra.mxu0 0.0
        %1104 = vmatpush.xpose.msra.mxu0 0.0
        %1105 = vmatpush.xpose.msra.mxu0 0.0
        %1106 = vmatpush.xpose.msra.mxu0 %v1089
        %1107 = vmatmul.f32.gmra.mxu0 %v1086
        %v1108 = vpop.f32.mrf.mxu0
        %v1109 = vadd.f32 0.0, %v1108
        %1110 = vdwg.mxu0
        %v1111 = vmul.f32 %v1083, 0.35355338
        %v1112 = vmul.f32 %v1109, 0.35355338
        %v1113 = vsel %vm1058, %v1111, -inf
        %1114 = vmax.xlane.f32.xlu0 %v1113
        %v1115 = vpop.xlane.xlu0 %1114
        %v1116 = vsel %vm1058, %v1112, -inf
        %1117 = vmax.xlane.f32.xlu0 %v1116
        %v1118 = vpop.xlane.xlu0 %1117
        %v1119 = vsub.f32 %v1111, %v1115
        %v1120 = vsub.f32 %v1112, %v1118
        %v1121 = vmul.f32 %v1119, 1.442695
        %v1122 = vpow.pop %v1121
        %v1123 = vmul.f32 %v1120, 1.442695
        %v1124 = vpow.pop %v1123
        %v1125 = vsel %vm1058, %v1122, 0.0
        %1126 = vadd.xlane.f32.xlu0 %v1125
        %v1127 = vpop.xlane.xlu0 %1126
        %v1128 = vsel %vm1058, %v1124, 0.0
        %1129 = vadd.xlane.f32.xlu0 %v1128
        %v1130 = vpop.xlane.xlu0 %1129
        %v1132 = vsel %vm1058, %v1122, 0
        %1134 = vmatpush.msra.mxu0 0.0
        %1135 = vmatpush.msra.mxu0 0.0
        %1136 = vmatpush.msra.mxu0 0.0
        %1137 = vmatpush.msra.mxu0 0.0
        %1138 = vmatpush.msra.mxu0 0.0
        %1139 = vmatpush.msra.mxu0 0.0
        %1140 = vmatpush.msra.mxu0 0.0
        %1141 = vmatpush.msra.mxu0 0.0
        %1142 = vmatpush.msra.mxu0 0.0
        %1143 = vmatpush.msra.mxu0 0.0
        %1144 = vmatpush.msra.mxu0 0.0
        %1145 = vmatpush.msra.mxu0 0.0
        %1146 = vmatpush.msra.mxu0 0.0
        %1147 = vmatpush.msra.mxu0 0.0
        %1148 = vmatpush.msra.mxu0 0.0
        %1149 = vmatpush.msra.mxu0 %v1053
        %1150 = vmatmul.f32.gmra.mxu0 %v1132
        %v1151 = vpop.f32.mrf.mxu0
        %v1152 = vadd.f32 0.0, %v1151
        %1153 = vdwg.mxu0
        %v1155 = vsel %vm1058, %v1124, 0
        %1157 = vmatpush.msra.mxu0 0.0
        %1158 = vmatpush.msra.mxu0 0.0
        %1159 = vmatpush.msra.mxu0 0.0
        %1160 = vmatpush.msra.mxu0 0.0
        %1161 = vmatpush.msra.mxu0 0.0
        %1162 = vmatpush.msra.mxu0 0.0
        %1163 = vmatpush.msra.mxu0 0.0
        %1164 = vmatpush.msra.mxu0 0.0
        %1165 = vmatpush.msra.mxu0 0.0
        %1166 = vmatpush.msra.mxu0 0.0
        %1167 = vmatpush.msra.mxu0 0.0
        %1168 = vmatpush.msra.mxu0 0.0
        %1169 = vmatpush.msra.mxu0 0.0
        %1170 = vmatpush.msra.mxu0 0.0
        %1171 = vmatpush.msra.mxu0 0.0
        %1172 = vmatpush.msra.mxu0 %v1056
        %1173 = vmatmul.f32.gmra.mxu0 %v1155
        %v1174 = vpop.f32.mrf.mxu0
        %v1175 = vadd.f32 0.0, %v1174
        %1176 = vdwg.mxu0
        %v1177 = vrcp.pop %v1127
        %v1178 = vrcp.pop %v1130
        %v1179 = vmul.f32 %v1152, %v1177
        %v1180 = vmul.f32 %v1175, %v1178
        %1181 = vst.msk [vmem:[#allocation3] sm:$0xff] %vm1058, %v1179
        %1182 = vst.msk [vmem:[#allocation3 + $0x8] sm:$0xff] %vm1058, %v1180
        %1183 = vrot.lane.b32.xlu0 %v991, 120
        %v1184 = vpop.permute.xlu0 %1183
        %1185 = vrot.lane.b32.xlu0 %v1022, 120
        %v1186 = vpop.permute.xlu0 %1185
        %v1187 = vsel %vm1058, %v1184, 0
        %v1189 = vsel %vm1058, %v1186, 0
        %1191 = vmatpush.xpose.msra.mxu0 0.0
        %1192 = vmatpush.xpose.msra.mxu0 0.0
        %1193 = vmatpush.xpose.msra.mxu0 0.0
        %1194 = vmatpush.xpose.msra.mxu0 0.0
        %1195 = vmatpush.xpose.msra.mxu0 0.0
        %1196 = vmatpush.xpose.msra.mxu0 0.0
        %1197 = vmatpush.xpose.msra.mxu0 0.0
        %1198 = vmatpush.xpose.msra.mxu0 0.0
        %1199 = vmatpush.xpose.msra.mxu0 0.0
        %1200 = vmatpush.xpose.msra.mxu0 0.0
        %1201 = vmatpush.xpose.msra.mxu0 0.0
        %1202 = vmatpush.xpose.msra.mxu0 0.0
        %1203 = vmatpush.xpose.msra.mxu0 0.0
        %1204 = vmatpush.xpose.msra.mxu0 0.0
        %1205 = vmatpush.xpose.msra.mxu0 0.0
        %1206 = vmatpush.xpose.msra.mxu0 %v1189
        %1207 = vmatmul.f32.gmra.mxu0 %v1187
        %v1208 = vpop.f32.mrf.mxu0
        %v1209 = vadd.f32 0.0, %v1208
        %1210 = vdwg.mxu0
        %1211 = vrot.lane.b32.xlu0 %v994, 120
        %v1212 = vpop.permute.xlu0 %1211
        %1213 = vrot.lane.b32.xlu0 %v1025, 120
        %v1214 = vpop.permute.xlu0 %1213
        %v1215 = vsel %vm1058, %v1212, 0
        %v1217 = vsel %vm1058, %v1214, 0
        %1219 = vmatpush.xpose.msra.mxu0 0.0
        %1220 = vmatpush.xpose.msra.mxu0 0.0
        %1221 = vmatpush.xpose.msra.mxu0 0.0
        %1222 = vmatpush.xpose.msra.mxu0 0.0
        %1223 = vmatpush.xpose.msra.mxu0 0.0
        %1224 = vmatpush.xpose.msra.mxu0 0.0
        %1225 = vmatpush.xpose.msra.mxu0 0.0
        %1226 = vmatpush.xpose.msra.mxu0 0.0
        %1227 = vmatpush.xpose.msra.mxu0 0.0
        %1228 = vmatpush.xpose.msra.mxu0 0.0
        %1229 = vmatpush.xpose.msra.mxu0 0.0
        %1230 = vmatpush.xpose.msra.mxu0 0.0
        %1231 = vmatpush.xpose.msra.mxu0 0.0
        %1232 = vmatpush.xpose.msra.mxu0 0.0
        %1233 = vmatpush.xpose.msra.mxu0 0.0
        %1234 = vmatpush.xpose.msra.mxu0 %v1217
        %1235 = vmatmul.f32.gmra.mxu0 %v1215
        %v1236 = vpop.f32.mrf.mxu0
        %v1237 = vadd.f32 0.0, %v1236
        %1238 = vdwg.mxu0
        %v1239 = vmul.f32 %v1209, 0.35355338
        %v1240 = vmul.f32 %v1237, 0.35355338
        %v1241 = vsel %vm1058, %v1239, -inf
        %1242 = vmax.xlane.f32.xlu0 %v1241
        %v1243 = vpop.xlane.xlu0 %1242
        %v1244 = vsel %vm1058, %v1240, -inf
        %1245 = vmax.xlane.f32.xlu0 %v1244
        %v1246 = vpop.xlane.xlu0 %1245
        %v1247 = vsub.f32 %v1239, %v1243
        %v1248 = vsub.f32 %v1240, %v1246
        %v1249 = vmul.f32 %v1247, 1.442695
        %v1250 = vpow.pop %v1249
        %v1251 = vmul.f32 %v1248, 1.442695
        %v1252 = vpow.pop %v1251
        %v1253 = vsel %vm1058, %v1250, 0.0
        %1254 = vadd.xlane.f32.xlu0 %v1253
        %v1255 = vpop.xlane.xlu0 %1254
        %v1256 = vsel %vm1058, %v1252, 0.0
        %1257 = vadd.xlane.f32.xlu0 %v1256
        %v1258 = vpop.xlane.xlu0 %1257
        %1260 = vrot.lane.b32.xlu0 %v1053, 120
        %v1261 = vpop.permute.xlu0 %1260
        %v1264 = vsel %vm1058, %v1250, 0
        %1266 = vmatpush.msra.mxu0 0.0
        %1267 = vmatpush.msra.mxu0 0.0
        %1268 = vmatpush.msra.mxu0 0.0
        %1269 = vmatpush.msra.mxu0 0.0
        %1270 = vmatpush.msra.mxu0 0.0
        %1271 = vmatpush.msra.mxu0 0.0
        %1272 = vmatpush.msra.mxu0 0.0
        %1273 = vmatpush.msra.mxu0 0.0
        %1274 = vmatpush.msra.mxu0 0.0
        %1275 = vmatpush.msra.mxu0 0.0
        %1276 = vmatpush.msra.mxu0 0.0
        %1277 = vmatpush.msra.mxu0 0.0
        %1278 = vmatpush.msra.mxu0 0.0
        %1279 = vmatpush.msra.mxu0 0.0
        %1280 = vmatpush.msra.mxu0 0.0
        %1281 = vmatpush.msra.mxu0 %v1261
        %1282 = vmatmul.f32.gmra.mxu0 %v1264
        %v1283 = vpop.f32.mrf.mxu0
        %v1284 = vadd.f32 0.0, %v1283
        %1285 = vdwg.mxu0
        %1287 = vrot.lane.b32.xlu0 %v1056, 120
        %v1288 = vpop.permute.xlu0 %1287
        %v1291 = vsel %vm1058, %v1252, 0
        %1293 = vmatpush.msra.mxu0 0.0
        %1294 = vmatpush.msra.mxu0 0.0
        %1295 = vmatpush.msra.mxu0 0.0
        %1296 = vmatpush.msra.mxu0 0.0
        %1297 = vmatpush.msra.mxu0 0.0
        %1298 = vmatpush.msra.mxu0 0.0
        %1299 = vmatpush.msra.mxu0 0.0
        %1300 = vmatpush.msra.mxu0 0.0
        %1301 = vmatpush.msra.mxu0 0.0
        %1302 = vmatpush.msra.mxu0 0.0
        %1303 = vmatpush.msra.mxu0 0.0
        %1304 = vmatpush.msra.mxu0 0.0
        %1305 = vmatpush.msra.mxu0 0.0
        %1306 = vmatpush.msra.mxu0 0.0
        %1307 = vmatpush.msra.mxu0 0.0
        %1308 = vmatpush.msra.mxu0 %v1288
        %1309 = vmatmul.f32.gmra.mxu0 %v1291
        %v1310 = vpop.f32.mrf.mxu0
        %v1311 = vadd.f32 0.0, %v1310
        %1312 = vdwg.mxu0
        %v1313 = vrcp.pop %v1255
        %v1314 = vrcp.pop %v1258
        %v1315 = vmul.f32 %v1284, %v1313
        %v1316 = vmul.f32 %v1311, %v1314
        %1319 = vrot.lane.b32.xlu0 %v1315, 8
        %v1320 = vpop.permute.xlu0 %1319
        %1321 = vrot.lane.b32.xlu0 %v1316, 8
        %v1322 = vpop.permute.xlu0 %1321
        %vm1325 = vcmask 130112
        %1326 = vst.msk [vmem:[#allocation3] sm:$0xff] %vm1325, %v1320
        %1327 = vst.msk [vmem:[#allocation3 + $0x8] sm:$0xff] %vm1325, %v1322
        %1328 = vrot.lane.b32.xlu0 %v991, 112
        %v1329 = vpop.permute.xlu0 %1328
        %1330 = vrot.lane.b32.xlu0 %v1022, 112
        %v1331 = vpop.permute.xlu0 %1330
        %v1332 = vsel %vm1058, %v1329, 0
        %v1334 = vsel %vm1058, %v1331, 0
        %1336 = vmatpush.xpose.msra.mxu0 0.0
        %1337 = vmatpush.xpose.msra.mxu0 0.0
        %1338 = vmatpush.xpose.msra.mxu0 0.0
        %1339 = vmatpush.xpose.msra.mxu0 0.0
        %1340 = vmatpush.xpose.msra.mxu0 0.0
        %1341 = vmatpush.xpose.msra.mxu0 0.0
        %1342 = vmatpush.xpose.msra.mxu0 0.0
        %1343 = vmatpush.xpose.msra.mxu0 0.0
        %1344 = vmatpush.xpose.msra.mxu0 0.0
        %1345 = vmatpush.xpose.msra.mxu0 0.0
        %1346 = vmatpush.xpose.msra.mxu0 0.0
        %1347 = vmatpush.xpose.msra.mxu0 0.0
        %1348 = vmatpush.xpose.msra.mxu0 0.0
        %1349 = vmatpush.xpose.msra.mxu0 0.0
        %1350 = vmatpush.xpose.msra.mxu0 0.0
        %1351 = vmatpush.xpose.msra.mxu0 %v1334
        %1352 = vmatmul.f32.gmra.mxu0 %v1332
        %v1353 = vpop.f32.mrf.mxu0
        %v1354 = vadd.f32 0.0, %v1353
        %1355 = vdwg.mxu0
        %1356 = vrot.lane.b32.xlu0 %v994, 112
        %v1357 = vpop.permute.xlu0 %1356
        %1358 = vrot.lane.b32.xlu0 %v1025, 112
        %v1359 = vpop.permute.xlu0 %1358
        %v1360 = vsel %vm1058, %v1357, 0
        %v1362 = vsel %vm1058, %v1359, 0
        %1364 = vmatpush.xpose.msra.mxu0 0.0
        %1365 = vmatpush.xpose.msra.mxu0 0.0
        %1366 = vmatpush.xpose.msra.mxu0 0.0
        %1367 = vmatpush.xpose.msra.mxu0 0.0
        %1368 = vmatpush.xpose.msra.mxu0 0.0
        %1369 = vmatpush.xpose.msra.mxu0 0.0
        %1370 = vmatpush.xpose.msra.mxu0 0.0
        %1371 = vmatpush.xpose.msra.mxu0 0.0
        %1372 = vmatpush.xpose.msra.mxu0 0.0
        %1373 = vmatpush.xpose.msra.mxu0 0.0
        %1374 = vmatpush.xpose.msra.mxu0 0.0
        %1375 = vmatpush.xpose.msra.mxu0 0.0
        %1376 = vmatpush.xpose.msra.mxu0 0.0
        %1377 = vmatpush.xpose.msra.mxu0 0.0
        %1378 = vmatpush.xpose.msra.mxu0 0.0
        %1379 = vmatpush.xpose.msra.mxu0 %v1362
        %1380 = vmatmul.f32.gmra.mxu0 %v1360
        %v1381 = vpop.f32.mrf.mxu0
        %v1382 = vadd.f32 0.0, %v1381
        %1383 = vdwg.mxu0
        %v1384 = vmul.f32 %v1354, 0.35355338
        %v1385 = vmul.f32 %v1382, 0.35355338
        %v1386 = vsel %vm1058, %v1384, -inf
        %1387 = vmax.xlane.f32.xlu0 %v1386
        %v1388 = vpop.xlane.xlu0 %1387
        %v1389 = vsel %vm1058, %v1385, -inf
        %1390 = vmax.xlane.f32.xlu0 %v1389
        %v1391 = vpop.xlane.xlu0 %1390
        %v1392 = vsub.f32 %v1384, %v1388
        %v1393 = vsub.f32 %v1385, %v1391
        %v1394 = vmul.f32 %v1392, 1.442695
        %v1395 = vpow.pop %v1394
        %v1396 = vmul.f32 %v1393, 1.442695
        %v1397 = vpow.pop %v1396
        %v1398 = vsel %vm1058, %v1395, 0.0
        %1399 = vadd.xlane.f32.xlu0 %v1398
        %v1400 = vpop.xlane.xlu0 %1399
        %v1401 = vsel %vm1058, %v1397, 0.0
        %1402 = vadd.xlane.f32.xlu0 %v1401
        %v1403 = vpop.xlane.xlu0 %1402
        %1404 = vrot.lane.b32.xlu0 %v1053, 112
        %v1405 = vpop.permute.xlu0 %1404
        %v1408 = vsel %vm1058, %v1395, 0
        %1410 = vmatpush.msra.mxu0 0.0
        %1411 = vmatpush.msra.mxu0 0.0
        %1412 = vmatpush.msra.mxu0 0.0
        %1413 = vmatpush.msra.mxu0 0.0
        %1414 = vmatpush.msra.mxu0 0.0
        %1415 = vmatpush.msra.mxu0 0.0
        %1416 = vmatpush.msra.mxu0 0.0
        %1417 = vmatpush.msra.mxu0 0.0
        %1418 = vmatpush.msra.mxu0 0.0
        %1419 = vmatpush.msra.mxu0 0.0
        %1420 = vmatpush.msra.mxu0 0.0
        %1421 = vmatpush.msra.mxu0 0.0
        %1422 = vmatpush.msra.mxu0 0.0
        %1423 = vmatpush.msra.mxu0 0.0
        %1424 = vmatpush.msra.mxu0 0.0
        %1425 = vmatpush.msra.mxu0 %v1405
        %1426 = vmatmul.f32.gmra.mxu0 %v1408
        %v1427 = vpop.f32.mrf.mxu0
        %v1428 = vadd.f32 0.0, %v1427
        %1429 = vdwg.mxu0
        %1430 = vrot.lane.b32.xlu0 %v1056, 112
        %v1431 = vpop.permute.xlu0 %1430
        %v1434 = vsel %vm1058, %v1397, 0
        %1436 = vmatpush.msra.mxu0 0.0
        %1437 = vmatpush.msra.mxu0 0.0
        %1438 = vmatpush.msra.mxu0 0.0
        %1439 = vmatpush.msra.mxu0 0.0
        %1440 = vmatpush.msra.mxu0 0.0
        %1441 = vmatpush.msra.mxu0 0.0
        %1442 = vmatpush.msra.mxu0 0.0
        %1443 = vmatpush.msra.mxu0 0.0
        %1444 = vmatpush.msra.mxu0 0.0
        %1445 = vmatpush.msra.mxu0 0.0
        %1446 = vmatpush.msra.mxu0 0.0
        %1447 = vmatpush.msra.mxu0 0.0
        %1448 = vmatpush.msra.mxu0 0.0
        %1449 = vmatpush.msra.mxu0 0.0
        %1450 = vmatpush.msra.mxu0 0.0
        %1451 = vmatpush.msra.mxu0 %v1431
        %1452 = vmatmul.f32.gmra.mxu0 %v1434
        %v1453 = vpop.f32.mrf.mxu0
        %v1454 = vadd.f32 0.0, %v1453
        %1455 = vdwg.mxu0
        %v1456 = vrcp.pop %v1400
        %v1457 = vrcp.pop %v1403
        %v1458 = vmul.f32 %v1428, %v1456
        %v1459 = vmul.f32 %v1454, %v1457
        %1462 = vrot.lane.b32.xlu0 %v1458, 16
        %v1463 = vpop.permute.xlu0 %1462
        %1464 = vrot.lane.b32.xlu0 %v1459, 16
        %v1465 = vpop.permute.xlu0 %1464
        %vm1468 = vcmask 195712
        %1469 = vst.msk [vmem:[#allocation3] sm:$0xff] %vm1468, %v1463
        %1470 = vst.msk [vmem:[#allocation3 + $0x8] sm:$0xff] %vm1468, %v1465
        %1471 = vrot.lane.b32.xlu0 %v991, 104
        %v1472 = vpop.permute.xlu0 %1471
        %1473 = vrot.lane.b32.xlu0 %v1022, 104
        %v1474 = vpop.permute.xlu0 %1473
        %v1475 = vsel %vm1058, %v1472, 0
        %v1477 = vsel %vm1058, %v1474, 0
        %1479 = vmatpush.xpose.msra.mxu0 0.0
        %1480 = vmatpush.xpose.msra.mxu0 0.0
        %1481 = vmatpush.xpose.msra.mxu0 0.0
        %1482 = vmatpush.xpose.msra.mxu0 0.0
        %1483 = vmatpush.xpose.msra.mxu0 0.0
        %1484 = vmatpush.xpose.msra.mxu0 0.0
        %1485 = vmatpush.xpose.msra.mxu0 0.0
        %1486 = vmatpush.xpose.msra.mxu0 0.0
        %1487 = vmatpush.xpose.msra.mxu0 0.0
        %1488 = vmatpush.xpose.msra.mxu0 0.0
        %1489 = vmatpush.xpose.msra.mxu0 0.0
        %1490 = vmatpush.xpose.msra.mxu0 0.0
        %1491 = vmatpush.xpose.msra.mxu0 0.0
        %1492 = vmatpush.xpose.msra.mxu0 0.0
        %1493 = vmatpush.xpose.msra.mxu0 0.0
        %1494 = vmatpush.xpose.msra.mxu0 %v1477
        %1495 = vmatmul.f32.gmra.mxu0 %v1475
        %v1496 = vpop.f32.mrf.mxu0
        %v1497 = vadd.f32 0.0, %v1496
        %1498 = vdwg.mxu0
        %1499 = vrot.lane.b32.xlu0 %v994, 104
        %v1500 = vpop.permute.xlu0 %1499
        %1501 = vrot.lane.b32.xlu0 %v1025, 104
        %v1502 = vpop.permute.xlu0 %1501
        %v1503 = vsel %vm1058, %v1500, 0
        %v1505 = vsel %vm1058, %v1502, 0
        %1507 = vmatpush.xpose.msra.mxu0 0.0
        %1508 = vmatpush.xpose.msra.mxu0 0.0
        %1509 = vmatpush.xpose.msra.mxu0 0.0
        %1510 = vmatpush.xpose.msra.mxu0 0.0
        %1511 = vmatpush.xpose.msra.mxu0 0.0
        %1512 = vmatpush.xpose.msra.mxu0 0.0
        %1513 = vmatpush.xpose.msra.mxu0 0.0
        %1514 = vmatpush.xpose.msra.mxu0 0.0
        %1515 = vmatpush.xpose.msra.mxu0 0.0
        %1516 = vmatpush.xpose.msra.mxu0 0.0
        %1517 = vmatpush.xpose.msra.mxu0 0.0
        %1518 = vmatpush.xpose.msra.mxu0 0.0
        %1519 = vmatpush.xpose.msra.mxu0 0.0
        %1520 = vmatpush.xpose.msra.mxu0 0.0
        %1521 = vmatpush.xpose.msra.mxu0 0.0
        %1522 = vmatpush.xpose.msra.mxu0 %v1505
        %1523 = vmatmul.f32.gmra.mxu0 %v1503
        %v1524 = vpop.f32.mrf.mxu0
        %v1525 = vadd.f32 0.0, %v1524
        %1526 = vdwg.mxu0
        %v1527 = vmul.f32 %v1497, 0.35355338
        %v1528 = vmul.f32 %v1525, 0.35355338
        %v1529 = vsel %vm1058, %v1527, -inf
        %1530 = vmax.xlane.f32.xlu0 %v1529
        %v1531 = vpop.xlane.xlu0 %1530
        %v1532 = vsel %vm1058, %v1528, -inf
        %1533 = vmax.xlane.f32.xlu0 %v1532
        %v1534 = vpop.xlane.xlu0 %1533
        %v1535 = vsub.f32 %v1527, %v1531
        %v1536 = vsub.f32 %v1528, %v1534
        %v1537 = vmul.f32 %v1535, 1.442695
        %v1538 = vpow.pop %v1537
        %v1539 = vmul.f32 %v1536, 1.442695
        %v1540 = vpow.pop %v1539
        %v1541 = vsel %vm1058, %v1538, 0.0
        %1542 = vadd.xlane.f32.xlu0 %v1541
        %v1543 = vpop.xlane.xlu0 %1542
        %v1544 = vsel %vm1058, %v1540, 0.0
        %1545 = vadd.xlane.f32.xlu0 %v1544
        %v1546 = vpop.xlane.xlu0 %1545
        %1547 = vrot.lane.b32.xlu0 %v1053, 104
        %v1548 = vpop.permute.xlu0 %1547
        %v1551 = vsel %vm1058, %v1538, 0
        %1553 = vmatpush.msra.mxu0 0.0
        %1554 = vmatpush.msra.mxu0 0.0
        %1555 = vmatpush.msra.mxu0 0.0
        %1556 = vmatpush.msra.mxu0 0.0
        %1557 = vmatpush.msra.mxu0 0.0
        %1558 = vmatpush.msra.mxu0 0.0
        %1559 = vmatpush.msra.mxu0 0.0
        %1560 = vmatpush.msra.mxu0 0.0
        %1561 = vmatpush.msra.mxu0 0.0
        %1562 = vmatpush.msra.mxu0 0.0
        %1563 = vmatpush.msra.mxu0 0.0
        %1564 = vmatpush.msra.mxu0 0.0
        %1565 = vmatpush.msra.mxu0 0.0
        %1566 = vmatpush.msra.mxu0 0.0
        %1567 = vmatpush.msra.mxu0 0.0
        %1568 = vmatpush.msra.mxu0 %v1548
        %1569 = vmatmul.f32.gmra.mxu0 %v1551
        %v1570 = vpop.f32.mrf.mxu0
        %v1571 = vadd.f32 0.0, %v1570
        %1572 = vdwg.mxu0
        %1573 = vrot.lane.b32.xlu0 %v1056, 104
        %v1574 = vpop.permute.xlu0 %1573
        %v1577 = vsel %vm1058, %v1540, 0
        %1579 = vmatpush.msra.mxu0 0.0
        %1580 = vmatpush.msra.mxu0 0.0
        %1581 = vmatpush.msra.mxu0 0.0
        %1582 = vmatpush.msra.mxu0 0.0
        %1583 = vmatpush.msra.mxu0 0.0
        %1584 = vmatpush.msra.mxu0 0.0
        %1585 = vmatpush.msra.mxu0 0.0
        %1586 = vmatpush.msra.mxu0 0.0
        %1587 = vmatpush.msra.mxu0 0.0
        %1588 = vmatpush.msra.mxu0 0.0
        %1589 = vmatpush.msra.mxu0 0.0
        %1590 = vmatpush.msra.mxu0 0.0
        %1591 = vmatpush.msra.mxu0 0.0
        %1592 = vmatpush.msra.mxu0 0.0
        %1593 = vmatpush.msra.mxu0 0.0
        %1594 = vmatpush.msra.mxu0 %v1574
        %1595 = vmatmul.f32.gmra.mxu0 %v1577
        %v1596 = vpop.f32.mrf.mxu0
        %v1597 = vadd.f32 0.0, %v1596
        %1598 = vdwg.mxu0
        %v1599 = vrcp.pop %v1543
        %v1600 = vrcp.pop %v1546
        %v1601 = vmul.f32 %v1571, %v1599
        %v1602 = vmul.f32 %v1597, %v1600
        %1605 = vrot.lane.b32.xlu0 %v1601, 24
        %v1606 = vpop.permute.xlu0 %1605
        %1607 = vrot.lane.b32.xlu0 %v1602, 24
        %v1608 = vpop.permute.xlu0 %1607
        %vm1611 = vcmask 261312
        %1612 = vst.msk [vmem:[#allocation3] sm:$0xff] %vm1611, %v1606
        %1613 = vst.msk [vmem:[#allocation3 + $0x8] sm:$0xff] %vm1611, %v1608
        %v1614 = vld [vmem:[#allocation3] sm:$0xff]
        %v1615 = vld [vmem:[#allocation3 + $0x8] sm:$0xff]
        %v1616 = vld [vmem:[%s759] sm:$0xff]
        %v1617 = vld [vmem:[%s759 + $0x8] sm:$0xff]
        %v1618 = vld [vmem:[%s759 + $0x10] sm:$0xff]
        %v1619 = vld [vmem:[%s759 + $0x18] sm:$0xff]
        %v1620 = vld [vmem:[%s768] sm:$0x1]
        %v1622 = vperm.slane %v1620, 0
        %v1625 = vsel %vm966, %v1614, 0
        %v1628 = vsel %vm966, %v1615, 0
        %1630 = vmatpush.msra.mxu0 0.0
        %1631 = vmatpush.msra.mxu0 0.0
        %1632 = vmatpush.msra.mxu0 0.0
        %1633 = vmatpush.msra.mxu0 0.0
        %1634 = vmatpush.msra.mxu0 0.0
        %1635 = vmatpush.msra.mxu0 0.0
        %1636 = vmatpush.msra.mxu0 0.0
        %1637 = vmatpush.msra.mxu0 0.0
        %1638 = vmatpush.msra.mxu0 0.0
        %1639 = vmatpush.msra.mxu0 0.0
        %1640 = vmatpush.msra.mxu0 0.0
        %1641 = vmatpush.msra.mxu0 0.0
        %1642 = vmatpush.msra.mxu0 %v1619
        %1643 = vmatpush.msra.mxu0 %v1618
        %1644 = vmatpush.msra.mxu0 %v1617
        %1645 = vmatpush.msra.mxu0 %v1616
        %1646 = vmatmul.f32.gmra.mxu0 %v1625
        %v1647 = vpop.f32.mrf.mxu0
        %v1648 = vadd.f32 %v1622, %v1647
        %1649 = vmatmul.f32.gmra.mxu0 %v1628
        %v1650 = vpop.f32.mrf.mxu0
        %v1651 = vadd.f32 %v1622, %v1650
        %1652 = vdwg.mxu0
        %v1653 = vadd.f32 %v956, %v1648
        %v1654 = vadd.f32 %v957, %v1651
        %v1655 = vsel %vm966, %v1653, 0.0
        %1656 = vadd.xlane.f32.xlu0 %v1655
        %v1657 = vpop.xlane.xlu0 %1656
        %v1658 = vsel %vm966, %v1654, 0.0
        %1659 = vadd.xlane.f32.xlu0 %v1658
        %v1660 = vpop.xlane.xlu0 %1659
        %v1661 = vrcp.pop 32.0
        %v1662 = vmul.f32 32.0, %v1661
        %v1663 = vsub.f32 1.0, %v1662
        %v1664 = vmul.f32 %v1661, %v1663
        %v1665 = vadd.f32 %v1661, %v1664
        %vm1666 = vweird.f32 %v1661
        %v1667 = vsel %vm1666, %v1661, %v1665
        %v1668 = vmul.f32 %v1657, %v1667
        %v1669 = vmul.f32 %v1660, %v1667
        %v1670 = vsub.f32 %v1653, %v1668
        %v1671 = vsub.f32 %v1654, %v1669
        %v1672 = vmul.f32 %v1670, %v1670
        %v1673 = vmul.f32 %v1671, %v1671
        %v1674 = vsel %vm966, %v1672, 0.0
        %1675 = vadd.xlane.f32.xlu0 %v1674
        %v1676 = vpop.xlane.xlu0 %1675
        %v1677 = vsel %vm966, %v1673, 0.0
        %1678 = vadd.xlane.f32.xlu0 %v1677
        %v1679 = vpop.xlane.xlu0 %1678
        %v1680 = vmul.f32 %v1676, %v1667
        %v1681 = vmul.f32 %v1679, %v1667
        %v1682 = vadd.f32 %v1680, 1e-05
        %v1683 = vadd.f32 %v1681, 1e-05
        %v1684 = vrsqrt.pop %v1682
        %v1685 = vmul.f32 %v1684, %v1682
        %v1686 = vmul.f32 %v1685, %v1684
        %v1687 = vmul.f32 0.5, %v1686
        %v1688 = vsub.f32 1.5, %v1687
        %v1689 = vmul.f32 %v1684, %v1688
        %vm1690 = vweird.f32 %v1682
        %vm1691 = vweird.f32 %v1684
        %vm1692 = vmor %vm1690, %vm1691
        %v1693 = vsel %vm1692, %v1684, %v1689
        %v1694 = vrsqrt.pop %v1683
        %v1695 = vmul.f32 %v1694, %v1683
        %v1696 = vmul.f32 %v1695, %v1694
        %v1697 = vmul.f32 0.5, %v1696
        %v1698 = vsub.f32 1.5, %v1697
        %v1699 = vmul.f32 %v1694, %v1698
        %vm1700 = vweird.f32 %v1683
        %vm1701 = vweird.f32 %v1694
        %vm1702 = vmor %vm1700, %vm1701
        %v1703 = vsel %vm1702, %v1694, %v1699
        %v1704 = vmul.f32 %v1670, %v1693
        %v1705 = vmul.f32 %v1671, %v1703
        %v1706 = vld [vmem:[%s931] sm:$0x1]
        %v1708 = vperm.slane %v1706, 0
        %v1710 = vmul.f32 %v1704, %v1708
        %v1711 = vmul.f32 %v1705, %v1708
        %v1712 = vld [vmem:[%s934] sm:$0x1]
        %v1714 = vperm.slane %v1712, 0
        %v1716 = vadd.f32 %v1710, %v1714
        %v1717 = vadd.f32 %v1711, %v1714
        %v1718 = vld [vmem:[%s787] sm:$0xff]
        %v1719 = vld [vmem:[%s787 + $0x8] sm:$0xff]
        %v1720 = vld [vmem:[%s787 + $0x10] sm:$0xff]
        %v1721 = vld [vmem:[%s787 + $0x18] sm:$0xff]
        %v1722 = vld [vmem:[%s796] sm:$0x1]
        %v1724 = vperm.slane %v1722, 0
        %v1727 = vsel %vm966, %v1716, 0
        %v1730 = vsel %vm966, %v1717, 0
        %1732 = vmatpush.msra.mxu0 0.0
        %1733 = vmatpush.msra.mxu0 0.0
        %1734 = vmatpush.msra.mxu0 0.0
        %1735 = vmatpush.msra.mxu0 0.0
        %1736 = vmatpush.msra.mxu0 0.0
        %1737 = vmatpush.msra.mxu0 0.0
        %1738 = vmatpush.msra.mxu0 0.0
        %1739 = vmatpush.msra.mxu0 0.0
        %1740 = vmatpush.msra.mxu0 0.0
        %1741 = vmatpush.msra.mxu0 0.0
        %1742 = vmatpush.msra.mxu0 0.0
        %1743 = vmatpush.msra.mxu0 0.0
        %1744 = vmatpush.msra.mxu0 %v1721
        %1745 = vmatpush.msra.mxu0 %v1720
        %1746 = vmatpush.msra.mxu0 %v1719
        %1747 = vmatpush.msra.mxu0 %v1718
        %1748 = vmatmul.f32.gmra.mxu0 %v1727
        %v1749 = vpop.f32.mrf.mxu0
        %v1750 = vadd.f32 %v1724, %v1749
        %1751 = vmatmul.f32.gmra.mxu0 %v1730
        %v1752 = vpop.f32.mrf.mxu0
        %v1753 = vadd.f32 %v1724, %v1752
        %1754 = vdwg.mxu0
        %v1755 = vmax.f32 %v1750, 0.0
        %v1756 = vmax.f32 %v1753, 0.0
        %v1757 = vld [vmem:[%s942] sm:$0xff]
        %v1758 = vld [vmem:[%s942 + $0x8] sm:$0xff]
        %v1759 = vld [vmem:[%s942 + $0x10] sm:$0xff]
        %v1760 = vld [vmem:[%s942 + $0x18] sm:$0xff]
        %v1761 = vld [vmem:[%s942 + $0x20] sm:$0xff]
        %v1762 = vld [vmem:[%s942 + $0x28] sm:$0xff]
        %v1763 = vld [vmem:[%s942 + $0x30] sm:$0xff]
        %v1764 = vld [vmem:[%s942 + $0x38] sm:$0xff]
        %v1765 = vld [vmem:[%s945] sm:$0x1]
        %v1767 = vperm.slane %v1765, 0
        %vm1769 = vcmask 523264
        %v1771 = vsel %vm1769, %v1755, 0
        %v1774 = vsel %vm1769, %v1756, 0
        %1776 = vmatpush.msra.mxu0 0.0
        %1777 = vmatpush.msra.mxu0 0.0
        %1778 = vmatpush.msra.mxu0 0.0
        %1779 = vmatpush.msra.mxu0 0.0
        %1780 = vmatpush.msra.mxu0 0.0
        %1781 = vmatpush.msra.mxu0 0.0
        %1782 = vmatpush.msra.mxu0 0.0
        %1783 = vmatpush.msra.mxu0 0.0
        %1784 = vmatpush.msra.mxu0 %v1764
        %1785 = vmatpush.msra.mxu0 %v1763
        %1786 = vmatpush.msra.mxu0 %v1762
        %1787 = vmatpush.msra.mxu0 %v1761
        %1788 = vmatpush.msra.mxu0 %v1760
        %1789 = vmatpush.msra.mxu0 %v1759
        %1790 = vmatpush.msra.mxu0 %v1758
        %1791 = vmatpush.msra.mxu0 %v1757
        %1792 = vmatmul.f32.gmra.mxu0 %v1771
        %v1793 = vpop.f32.mrf.mxu0
        %v1794 = vadd.f32 %v1767, %v1793
        %1795 = vmatmul.f32.gmra.mxu0 %v1774
        %v1796 = vpop.f32.mrf.mxu0
        %v1797 = vadd.f32 %v1767, %v1796
        %1798 = vdwg.mxu0
        %v1799 = vadd.f32 %v1716, %v1794
        %v1800 = vadd.f32 %v1717, %v1797
        %v1801 = vsel %vm966, %v1799, 0.0
        %1802 = vadd.xlane.f32.xlu0 %v1801
        %v1803 = vpop.xlane.xlu0 %1802
        %v1804 = vsel %vm966, %v1800, 0.0
        %1805 = vadd.xlane.f32.xlu0 %v1804
        %v1806 = vpop.xlane.xlu0 %1805
        %v1807 = vmul.f32 %v1803, %v1667
        %v1808 = vmul.f32 %v1806, %v1667
        %v1809 = vsub.f32 %v1799, %v1807
        %v1810 = vsub.f32 %v1800, %v1808
        %v1811 = vmul.f32 %v1809, %v1809
        %v1812 = vmul.f32 %v1810, %v1810
        %v1813 = vsel %vm966, %v1811, 0.0
        %1814 = vadd.xlane.f32.xlu0 %v1813
        %v1815 = vpop.xlane.xlu0 %1814
        %v1816 = vsel %vm966, %v1812, 0.0
        %1817 = vadd.xlane.f32.xlu0 %v1816
        %v1818 = vpop.xlane.xlu0 %1817
        %v1819 = vmul.f32 %v1815, %v1667
        %v1820 = vmul.f32 %v1818, %v1667
        %v1821 = vadd.f32 %v1819, 1e-05
        %v1822 = vadd.f32 %v1820, 1e-05
        %v1823 = vrsqrt.pop %v1821
        %v1824 = vmul.f32 %v1823, %v1821
        %v1825 = vmul.f32 %v1824, %v1823
        %v1826 = vmul.f32 0.5, %v1825
        %v1827 = vsub.f32 1.5, %v1826
        %v1828 = vmul.f32 %v1823, %v1827
        %vm1829 = vweird.f32 %v1821
        %vm1830 = vweird.f32 %v1823
        %vm1831 = vmor %vm1829, %vm1830
        %v1832 = vsel %vm1831, %v1823, %v1828
        %v1833 = vrsqrt.pop %v1822
        %v1834 = vmul.f32 %v1833, %v1822
        %v1835 = vmul.f32 %v1834, %v1833
        %v1836 = vmul.f32 0.5, %v1835
        %v1837 = vsub.f32 1.5, %v1836
        %v1838 = vmul.f32 %v1833, %v1837
        %vm1839 = vweird.f32 %v1822
        %vm1840 = vweird.f32 %v1833
        %vm1841 = vmor %vm1839, %vm1840
        %v1842 = vsel %vm1841, %v1833, %v1838
        %v1843 = vmul.f32 %v1809, %v1832
        %v1844 = vmul.f32 %v1810, %v1842
        %v1845 = vld [vmem:[%s777] sm:$0x1]
        %v1847 = vperm.slane %v1845, 0
        %v1849 = vmul.f32 %v1843, %v1847
        %v1850 = vmul.f32 %v1844, %v1847
        %v1851 = vld [vmem:[%s937] sm:$0x1]
        %v1853 = vperm.slane %v1851, 0
        %v1855 = vadd.f32 %v1849, %v1853
        %v1856 = vadd.f32 %v1850, %v1853
        %1857 = vst.msk [vmem:[#allocation2] sm:$0xff] %vm966, %v1855
        %1858 = vst.msk [vmem:[#allocation2 + $0x8] sm:$0xff] %vm966, %v1856
        %1859 = vst.msk [vmem:[%s906] sm:$0xff] %vm966, %v1855
        %1860 = vst.msk [vmem:[%s906 + $0x8] sm:$0xff] %vm966, %v1856
        %s1861 = sand.u32 %s505, 1
        %s1862 = scalar_lea.sflag [#allocation6], %s1861
        %s1863 = sand.u32 %s505, 1
        %s1864 = smul.addr %s1863, 16
        %s1865 = scalar_lea.vmem [#allocation16], %s1864
        // Predicated region
        $region121: #{tpu_custom_call.1} parent=87 // pred_check
          %p1866 = pneg %p515
        $region122: #{tpu_custom_call.1} parent=87 // pred_check_branch
          %1868 = sbr.rel (%p1866) target = $region124
        $region123: #{tpu_custom_call.1} parent=87 // pred_region
          %s1869 = smul.u32 2, %s45
          %1871 = vsyncadd %s1862, 0
          %s1872 = smul.addr %s46, 2
          %s1873 = sadd.s32 %s1869, %s1872
          %s1874 = smul.addr %s1873, 8
          %s1875 = scalar_lea.hbm %s17, %s1874
          %s1876 = sshll.u32 %s1865, 4
          %s1877 = int_to_ptr.vmem [resolvable:$true] %s1876
          %s1878 = sshll.u32 %s1875, 4
          %s1879 = int_to_ptr.hbm [resolvable:$true] %s1878
          %1884 = dma.vmem_to_hbm [thread:$0]  %s1877, 256, %s1879, %s1862, 128, 128, 8
        $region124: #{tpu_custom_call.1} parent=87 // pred_fallthru
          _
      $region88: #{tpu_custom_call.1} parent=5 // pred_fallthru
        _
      %p1885 = scmp.le.s32.totalorder 2, %s36
      // Predicated region
      $region125: #{tpu_custom_call.1} parent=5 // pred_check
        %p1886 = pneg %p1885
      $region126: #{tpu_custom_call.1} parent=5 // pred_check_branch
        %1888 = sbr.rel (%p1886) target = $region128
      $region127: #{tpu_custom_call.1} parent=5 // pred_region
        %s1889 = ssub.s32 %s36, 2
        // Predicated region
        $region129: #{tpu_custom_call.1} parent=127 // pred_check
          %p1890 = pneg %p521
        $region130: #{tpu_custom_call.1} parent=127 // pred_check_branch
          %1892 = sbr.rel (%p1890) target = $region132
        $region131: #{tpu_custom_call.1} parent=127 // pred_region
          %s1893 = sand.u32 %s506, 1
          %s1894 = scalar_lea.sflag [#allocation6], %s1893
          %s1895 = sand.u32 %s506, 1
          %s1896 = smul.addr %s1895, 16
          %s1897 = scalar_lea.vmem [#allocation16], %s1896
          %1899 = dma.done %s1894, 256
        $region132: #{tpu_custom_call.1} parent=127 // pred_fallthru
          _
      $region128: #{tpu_custom_call.1} parent=5 // pred_fallthru
        _
    $region6: #{tpu_custom_call.1} parent=1 // loop_footer
      %s40 = sadd.s32 1, %s36
    $region7: #{tpu_custom_call.1} parent=1 // loop_footer_branch
      %35 = sbr.rel target = $region3
    $region8: #{tpu_custom_call.1} parent=1 // loop_exit
      _
    %1900 = vsyncpa [#allocation5], 1
    %s1901 = scalar_lea.sflag [#allocation5], 1
    %1902 = vsyncpa %s1901, 1
    %1903 = vsyncpa [#allocation8], 1
    %s1904 = scalar_lea.sflag [#allocation8], 1
    %1905 = vsyncpa %s1904, 1
    %1906 = vsyncpa [#allocation11], 1
    %s1907 = scalar_lea.sflag [#allocation11], 1
    %1908 = vsyncpa %s1907, 1
    %1909 = vsyncpa [#allocation14], 1
    %s1910 = scalar_lea.sflag [#allocation14], 1
    %1911 = vsyncpa %s1910, 1
    %1912 = vsyncpa [#allocation6], 1
    %s1913 = scalar_lea.sflag [#allocation6], 1
    %1914 = vsyncpa %s1913, 1

</llo_original>
